<compile_context>
chip_gen: v6e
topology: v6e:2x2x1
jax: 0.10.0
libtpu: 0.0.40
codegen_flags: <defaults>
</compile_context>

<pallas_src>
import jax
import jax.numpy as jnp
from jax.experimental import pallas as pl
from jax.experimental.pallas import tpu as pltpu


def _round_up(n, m):
    return ((n + m - 1) // m) * m


def sae_kernel(x_ref,
               w1_ref, b1_ref,
               w2_ref, b2_ref,
               w3_ref, b3_ref,
               w4_ref, b4_ref,
               o_ref):
    acc_t = jnp.float32
    x = x_ref[...]                                              # (TB, Np) bf16

    # fc1 + sigmoid
    z1 = jnp.dot(x, w1_ref[...], preferred_element_type=acc_t) + b1_ref[...]
    h1 = jax.nn.sigmoid(z1).astype(w2_ref.dtype)
    # fc2 + sigmoid
    z2 = jnp.dot(h1, w2_ref[...], preferred_element_type=acc_t) + b2_ref[...]
    h2 = jax.nn.sigmoid(z2).astype(w3_ref.dtype)
    # fc3 + sigmoid
    z3 = jnp.dot(h2, w3_ref[...], preferred_element_type=acc_t) + b3_ref[...]
    h3 = jax.nn.sigmoid(z3).astype(w4_ref.dtype)
    # fc4 (no activation)
    out = jnp.dot(h3, w4_ref[...], preferred_element_type=acc_t) + b4_ref[...]
    o_ref[...] = out.astype(o_ref.dtype)


def sae_forward(x, params, *, tb=256, compute_dtype=jnp.bfloat16):
    """params: dict with w1..w4 of shape (in, out) and b1..b4 of shape (1, out)."""
    B, n_movies = x.shape
    Np = _round_up(n_movies, 128)          # lane-dense last dim
    Bp = _round_up(max(B, 1), tb)          # whole number of batch tiles

    # Zero-pad: extra movie columns in x meet zero rows in w1 (no effect on
    # fc1); extra output columns from padded w4/b4 are sliced off afterwards.
    xp = jnp.zeros((Bp, Np), compute_dtype).at[:B, :n_movies].set(
        x.astype(compute_dtype))

    w1 = jnp.zeros((Np, 20), compute_dtype).at[:n_movies, :].set(
        params["w1"].astype(compute_dtype))
    w2 = params["w2"].astype(compute_dtype)
    w3 = params["w3"].astype(compute_dtype)
    w4 = jnp.zeros((20, Np), compute_dtype).at[:, :n_movies].set(
        params["w4"].astype(compute_dtype))
    b1 = params["b1"].astype(jnp.float32)
    b2 = params["b2"].astype(jnp.float32)
    b3 = params["b3"].astype(jnp.float32)
    b4 = jnp.zeros((1, Np), jnp.float32).at[:, :n_movies].set(
        params["b4"].astype(jnp.float32))

    def resident(arr):
        # Full-array block, same block index every grid step -> DMA'd once,
        # stays resident in VMEM across batch tiles.
        return pl.BlockSpec(arr.shape, lambda i: (0, 0))

    in_specs = [
        pl.BlockSpec((tb, Np), lambda i: (i, 0)),   # x batch tile
        resident(w1), resident(b1),
        resident(w2), resident(b2),
        resident(w3), resident(b3),
        resident(w4), resident(b4),
    ]
    out_specs = pl.BlockSpec((tb, Np), lambda i: (i, 0))

    weight_bytes = sum(int(a.size) * a.dtype.itemsize
                       for a in (w1, b1, w2, b2, w3, b3, w4, b4))
    cost = pl.CostEstimate(
        flops=2 * Bp * (Np * 20 + 20 * 10 + 10 * 20 + 20 * Np),
        transcendentals=Bp * (20 + 10 + 20),
        bytes_accessed=int(xp.size) * xp.dtype.itemsize
        + Bp * Np * 4
        + weight_bytes,
    )

    out = pl.pallas_call(
        sae_kernel,
        out_shape=jax.ShapeDtypeStruct((Bp, Np), jnp.float32),
        grid=(Bp // tb,),
        in_specs=in_specs,
        out_specs=out_specs,
        compiler_params=pltpu.CompilerParams(
            dimension_semantics=("parallel",)),
        cost_estimate=cost,
    )(xp, w1, b1, w2, b2, w3, b3, w4, b4)

    return out[:B, :n_movies]


def init_params(key, n_movies):
    """PyTorch nn.Linear default init: U(-1/sqrt(fan_in), 1/sqrt(fan_in))."""
    dims = [(n_movies, 20), (20, 10), (10, 20), (20, n_movies)]
    params = {}
    for i, (fan_in, fan_out) in enumerate(dims, start=1):
        key, kw, kb = jax.random.split(key, 3)
        bound = 1.0 / jnp.sqrt(float(fan_in))
        params[f"w{i}"] = jax.random.uniform(
            kw, (fan_in, fan_out), jnp.float32, -bound, bound)  # stored (in, out)
        params[f"b{i}"] = jax.random.uniform(
            kb, (1, fan_out), jnp.float32, -bound, bound)
    return params


def sae_reference(x, params, compute_dtype=jnp.bfloat16):
    """Precision-matched reference: bf16 matmul inputs, f32 accumulation."""
    h = x.astype(compute_dtype)
    h = jax.nn.sigmoid(
        jnp.dot(h, params["w1"].astype(compute_dtype),
                preferred_element_type=jnp.float32) + params["b1"])
    h = h.astype(compute_dtype)
    h = jax.nn.sigmoid(
        jnp.dot(h, params["w2"].astype(compute_dtype),
                preferred_element_type=jnp.float32) + params["b2"])
    h = h.astype(compute_dtype)
    h = jax.nn.sigmoid(
        jnp.dot(h, params["w3"].astype(compute_dtype),
                preferred_element_type=jnp.float32) + params["b3"])
    h = h.astype(compute_dtype)
    return jnp.dot(h, params["w4"].astype(compute_dtype),
                   preferred_element_type=jnp.float32) + params["b4"]


if __name__ == "__main__":
    n_movies = 128   # synthetic movie count (stands in for dataset n_movies)
    batch = 8

    key = jax.random.PRNGKey(0)
    key, kx = jax.random.split(key)
    params = init_params(key, n_movies)
    # ratings-like input in [0, 5]
    x = jax.random.uniform(kx, (batch, n_movies), jnp.float32, 0.0, 5.0)

    out = sae_forward(x, params)
    out = jax.block_until_ready(out)

    ref = sae_reference(x, params)
    assert out.shape == (batch, n_movies)
    assert jnp.allclose(out, ref, atol=1e-3, rtol=1e-3), "mismatch vs reference"

    print("KERNEL_OK")
</pallas_src>

<mosaic_0001>
module attributes {stable_mosaic.version = 11 : i64} {
  func.func @sae_kernel(%arg0: i32, %arg1: memref<256x128xbf16, #tpu.memory_space<vmem>>, %arg2: memref<128x20xbf16, #tpu.memory_space<vmem>>, %arg3: memref<1x20xf32, #tpu.memory_space<vmem>>, %arg4: memref<20x10xbf16, #tpu.memory_space<vmem>>, %arg5: memref<1x10xf32, #tpu.memory_space<vmem>>, %arg6: memref<10x20xbf16, #tpu.memory_space<vmem>>, %arg7: memref<1x20xf32, #tpu.memory_space<vmem>>, %arg8: memref<20x128xbf16, #tpu.memory_space<vmem>>, %arg9: memref<1x128xf32, #tpu.memory_space<vmem>>, %arg10: memref<256x128xf32, #tpu.memory_space<vmem>>) attributes {dimension_semantics = [#tpu.dimension_semantics<parallel>], iteration_bounds = array<i64: 1>, scalar_prefetch = 0 : i64, scratch_operands = 0 : i64, tpu.core_type = #tpu.core_type<tc>, window_params = [{transform_indices = @transform_0, window_bounds = array<i64: 256, 128>}, {pipeline_mode = #tpu.pipeline_mode<synchronous>, transform_indices = @transform_1, window_bounds = array<i64: 128, 20>}, {pipeline_mode = #tpu.pipeline_mode<synchronous>, transform_indices = @transform_2, window_bounds = array<i64: 1, 20>}, {pipeline_mode = #tpu.pipeline_mode<synchronous>, transform_indices = @transform_3, window_bounds = array<i64: 20, 10>}, {pipeline_mode = #tpu.pipeline_mode<synchronous>, transform_indices = @transform_4, window_bounds = array<i64: 1, 10>}, {pipeline_mode = #tpu.pipeline_mode<synchronous>, transform_indices = @transform_5, window_bounds = array<i64: 10, 20>}, {pipeline_mode = #tpu.pipeline_mode<synchronous>, transform_indices = @transform_6, window_bounds = array<i64: 1, 20>}, {pipeline_mode = #tpu.pipeline_mode<synchronous>, transform_indices = @transform_7, window_bounds = array<i64: 20, 128>}, {pipeline_mode = #tpu.pipeline_mode<synchronous>, transform_indices = @transform_8, window_bounds = array<i64: 1, 128>}, {transform_indices = @transform_9, window_bounds = array<i64: 256, 128>}]} {
    %c0 = arith.constant 0 : index
    %c0_0 = arith.constant 0 : index
    %0 = vector.load %arg1[%c0, %c0_0] : memref<256x128xbf16, #tpu.memory_space<vmem>>, vector<256x128xbf16>
    %c0_1 = arith.constant 0 : index
    %c0_2 = arith.constant 0 : index
    %1 = vector.load %arg2[%c0_1, %c0_2] : memref<128x20xbf16, #tpu.memory_space<vmem>>, vector<128x20xbf16>
    %cst = arith.constant dense<0.000000e+00> : vector<256x20xf32>
    %2 = tpu.matmul %0, %1, %cst {dimension_numbers = #tpu.dot_dimension_numbers<[1], [0], [0], [1], [0, 0, 1, 1], [], []>} : vector<256x128xbf16>, vector<128x20xbf16>, vector<256x20xf32> -> vector<256x20xf32>
    %c0_3 = arith.constant 0 : index
    %c0_4 = arith.constant 0 : index
    %3 = vector.load %arg3[%c0_3, %c0_4] : memref<1x20xf32, #tpu.memory_space<vmem>>, vector<1x20xf32>
    %4 = vector.broadcast %3 : vector<1x20xf32> to vector<256x20xf32>
    %5 = arith.addf %2, %4 : vector<256x20xf32>
    %6 = arith.negf %5 : vector<256x20xf32>
    %7 = math.exp %6 : vector<256x20xf32>
    %cst_5 = arith.constant 1.000000e+00 : f32
    %8 = vector.broadcast %cst_5 : f32 to vector<256x20xf32>
    %9 = arith.addf %8, %7 : vector<256x20xf32>
    %10 = arith.divf %8, %9 : vector<256x20xf32>
    %11 = arith.truncf %10 : vector<256x20xf32> to vector<256x20xbf16>
    %c0_6 = arith.constant 0 : index
    %c0_7 = arith.constant 0 : index
    %12 = vector.load %arg4[%c0_6, %c0_7] : memref<20x10xbf16, #tpu.memory_space<vmem>>, vector<20x10xbf16>
    %cst_8 = arith.constant dense<0.000000e+00> : vector<256x10xf32>
    %13 = tpu.matmul %11, %12, %cst_8 {dimension_numbers = #tpu.dot_dimension_numbers<[1], [0], [0], [1], [0, 0, 1, 1], [], []>} : vector<256x20xbf16>, vector<20x10xbf16>, vector<256x10xf32> -> vector<256x10xf32>
    %c0_9 = arith.constant 0 : index
    %c0_10 = arith.constant 0 : index
    %14 = vector.load %arg5[%c0_9, %c0_10] : memref<1x10xf32, #tpu.memory_space<vmem>>, vector<1x10xf32>
    %15 = vector.broadcast %14 : vector<1x10xf32> to vector<256x10xf32>
    %16 = arith.addf %13, %15 : vector<256x10xf32>
    %17 = arith.negf %16 : vector<256x10xf32>
    %18 = math.exp %17 : vector<256x10xf32>
    %cst_11 = arith.constant 1.000000e+00 : f32
    %19 = vector.broadcast %cst_11 : f32 to vector<256x10xf32>
    %20 = arith.addf %19, %18 : vector<256x10xf32>
    %21 = arith.divf %19, %20 : vector<256x10xf32>
    %22 = arith.truncf %21 : vector<256x10xf32> to vector<256x10xbf16>
    %c0_12 = arith.constant 0 : index
    %c0_13 = arith.constant 0 : index
    %23 = vector.load %arg6[%c0_12, %c0_13] : memref<10x20xbf16, #tpu.memory_space<vmem>>, vector<10x20xbf16>
    %cst_14 = arith.constant dense<0.000000e+00> : vector<256x20xf32>
    %24 = tpu.matmul %22, %23, %cst_14 {dimension_numbers = #tpu.dot_dimension_numbers<[1], [0], [0], [1], [0, 0, 1, 1], [], []>} : vector<256x10xbf16>, vector<10x20xbf16>, vector<256x20xf32> -> vector<256x20xf32>
    %c0_15 = arith.constant 0 : index
    %c0_16 = arith.constant 0 : index
    %25 = vector.load %arg7[%c0_15, %c0_16] : memref<1x20xf32, #tpu.memory_space<vmem>>, vector<1x20xf32>
    %26 = vector.broadcast %25 : vector<1x20xf32> to vector<256x20xf32>
    %27 = arith.addf %24, %26 : vector<256x20xf32>
    %28 = arith.negf %27 : vector<256x20xf32>
    %29 = math.exp %28 : vector<256x20xf32>
    %cst_17 = arith.constant 1.000000e+00 : f32
    %30 = vector.broadcast %cst_17 : f32 to vector<256x20xf32>
    %31 = arith.addf %30, %29 : vector<256x20xf32>
    %32 = arith.divf %30, %31 : vector<256x20xf32>
    %33 = arith.truncf %32 : vector<256x20xf32> to vector<256x20xbf16>
    %c0_18 = arith.constant 0 : index
    %c0_19 = arith.constant 0 : index
    %34 = vector.load %arg8[%c0_18, %c0_19] : memref<20x128xbf16, #tpu.memory_space<vmem>>, vector<20x128xbf16>
    %cst_20 = arith.constant dense<0.000000e+00> : vector<256x128xf32>
    %35 = tpu.matmul %33, %34, %cst_20 {dimension_numbers = #tpu.dot_dimension_numbers<[1], [0], [0], [1], [0, 0, 1, 1], [], []>} : vector<256x20xbf16>, vector<20x128xbf16>, vector<256x128xf32> -> vector<256x128xf32>
    %c0_21 = arith.constant 0 : index
    %c0_22 = arith.constant 0 : index
    %36 = vector.load %arg9[%c0_21, %c0_22] : memref<1x128xf32, #tpu.memory_space<vmem>>, vector<1x128xf32>
    %37 = vector.broadcast %36 : vector<1x128xf32> to vector<256x128xf32>
    %38 = arith.addf %35, %37 : vector<256x128xf32>
    %c0_23 = arith.constant 0 : index
    %c0_24 = arith.constant 0 : index
    %39 = vector.load %arg10[%c0_23, %c0_24] : memref<256x128xf32, #tpu.memory_space<vmem>>, vector<256x128xf32>
    tpu.vector_store %arg10[%c0_23, %c0_24], %38 {strides = array<i32>} : memref<256x128xf32, #tpu.memory_space<vmem>>, vector<256x128xf32>,
    return
  }
  func.func @transform_0(%arg0: i32) -> (i32, i32) {
    %c0_i32 = arith.constant 0 : i32
    %c0_i32_0 = arith.constant 0 : i32
    return %arg0, %c0_i32 : i32, i32
  }
  func.func @transform_1(%arg0: i32) -> (i32, i32) {
    %c0_i32 = arith.constant 0 : i32
    %c0_i32_0 = arith.constant 0 : i32
    %c0_i32_1 = arith.constant 0 : i32
    return %c0_i32, %c0_i32_0 : i32, i32
  }
  func.func @transform_2(%arg0: i32) -> (i32, i32) {
    %c0_i32 = arith.constant 0 : i32
    %c0_i32_0 = arith.constant 0 : i32
    %c0_i32_1 = arith.constant 0 : i32
    return %c0_i32, %c0_i32_0 : i32, i32
  }
  func.func @transform_3(%arg0: i32) -> (i32, i32) {
    %c0_i32 = arith.constant 0 : i32
    %c0_i32_0 = arith.constant 0 : i32
    %c0_i32_1 = arith.constant 0 : i32
    return %c0_i32, %c0_i32_0 : i32, i32
  }
  func.func @transform_4(%arg0: i32) -> (i32, i32) {
    %c0_i32 = arith.constant 0 : i32
    %c0_i32_0 = arith.constant 0 : i32
    %c0_i32_1 = arith.constant 0 : i32
    return %c0_i32, %c0_i32_0 : i32, i32
  }
  func.func @transform_5(%arg0: i32) -> (i32, i32) {
    %c0_i32 = arith.constant 0 : i32
    %c0_i32_0 = arith.constant 0 : i32
    %c0_i32_1 = arith.constant 0 : i32
    return %c0_i32, %c0_i32_0 : i32, i32
  }
  func.func @transform_6(%arg0: i32) -> (i32, i32) {
    %c0_i32 = arith.constant 0 : i32
    %c0_i32_0 = arith.constant 0 : i32
    %c0_i32_1 = arith.constant 0 : i32
    return %c0_i32, %c0_i32_0 : i32, i32
  }
  func.func @transform_7(%arg0: i32) -> (i32, i32) {
    %c0_i32 = arith.constant 0 : i32
    %c0_i32_0 = arith.constant 0 : i32
    %c0_i32_1 = arith.constant 0 : i32
    return %c0_i32, %c0_i32_0 : i32, i32
  }
  func.func @transform_8(%arg0: i32) -> (i32, i32) {
    %c0_i32 = arith.constant 0 : i32
    %c0_i32_0 = arith.constant 0 : i32
    %c0_i32_1 = arith.constant 0 : i32
    return %c0_i32, %c0_i32_0 : i32, i32
  }
  func.func @transform_9(%arg0: i32) -> (i32, i32) {
    %c0_i32 = arith.constant 0 : i32
    %c0_i32_0 = arith.constant 0 : i32
    return %arg0, %c0_i32 : i32, i32
  }
}

</mosaic_0001>

<llo_original>
// kernel: tpu_custom_call.1
$region0: #{tpu_custom_call.1}
  #allocation0 [shape = 'u32[]', space=smem, size = 0x4, offset = 0x4, fixed_abs, tag = 'smem constant byte address 0x4 - core index']
  #allocation1 [shape = 'u32[144,128]{1,0:T(1,128)}', space=vmem, size = 0x12000, scoped, tag = 'internal scratch']
  %s0 = inlined_call_operand.hbm [shape: bf16[256,128], index: 0, kind: input, shape index: {}]
  %s1 = inlined_call_operand.vmem [shape: bf16[128,20], index: 1, kind: input, shape index: {}]
  %s2 = inlined_call_operand.vmem [shape: f32[1,20], index: 2, kind: input, shape index: {}]
  %s3 = inlined_call_operand.vmem [shape: bf16[20,10], index: 3, kind: input, shape index: {}]
  %s4 = inlined_call_operand.vmem [shape: f32[1,10], index: 4, kind: input, shape index: {}]
  %s5 = inlined_call_operand.vmem [shape: bf16[10,20], index: 5, kind: input, shape index: {}]
  %s6 = inlined_call_operand.vmem [shape: f32[1,20], index: 6, kind: input, shape index: {}]
  %s7 = inlined_call_operand.vmem [shape: bf16[20,128], index: 7, kind: input, shape index: {}]
  %s8 = inlined_call_operand.vmem [shape: f32[1,128], index: 8, kind: input, shape index: {}]
  %s9 = inlined_call_operand.hbm [shape: f32[256,128], index: 9, kind: output, shape index: {}]
  %s10 = sld [smem:[#allocation0]]
  $region50: #{tpu_custom_call.1} parent=0
    _
  %s12 = ssub.s32 1, %s10
  %s13 = scalar_select 0, %s12, %s10
  $region1: #{tpu_custom_call.1} parent=0
    #allocation2 [shape = 'u8[65536]{0}', space=vmem, size = 0x10000, scoped, tag = 'input window, operand 0, single buffered']
    #allocation3 [shape = 's32[1]{0}', space=sflag, size = 0x4, scoped, tag = 'scoped memory for tpu_custom_call.1']
    #allocation4 [shape = 's32[1]{0}', space=sflag, size = 0x4, scoped, tag = 'scoped memory for tpu_custom_call.1']
    #allocation5 [shape = 'u8[131072]{0}', space=vmem, size = 0x20000, scoped, tag = 'output window, operand 0, single buffered']
    %14 = vsyncpa [#allocation3], 0
    %15 = vsyncpa [#allocation4], 0
    // Predicated region
    $region2: #{tpu_custom_call.1} parent=1 // pred_check
      _
    $region3: #{tpu_custom_call.1} parent=1 // pred_check_branch
      %17 = sbr.rel (0) target = $region5
    $region4: #{tpu_custom_call.1} parent=1 // pred_region
      %s19 = ssub.s32 2048, 2048
      %20 = vsyncadd [#allocation3], %s19
      %s21 = sshll.u32 [#allocation2], 4
      %s22 = int_to_ptr.vmem [resolvable:$true] %s21
      %27 = dma.hbm_to_vmem [thread:$0]  %s0, 2048, %s22, [#allocation3], 64, 64, 4
    $region5: #{tpu_custom_call.1} parent=1 // pred_fallthru
      _
    // Predicated region
    $region6: #{tpu_custom_call.1} parent=1 // pred_check
      _
    $region7: #{tpu_custom_call.1} parent=1 // pred_check_branch
      %29 = sbr.rel (0) target = $region9
    $region8: #{tpu_custom_call.1} parent=1 // pred_region
      _
    $region9: #{tpu_custom_call.1} parent=1 // pred_fallthru
      _
    // Predicated region
    $region10: #{tpu_custom_call.1} parent=1 // pred_check
      _
    $region11: #{tpu_custom_call.1} parent=1 // pred_check_branch
      %31 = sbr.rel (0) target = $region13
    $region12: #{tpu_custom_call.1} parent=1 // pred_region
      _
    $region13: #{tpu_custom_call.1} parent=1 // pred_fallthru
      _
    // Predicated region
    $region14: #{tpu_custom_call.1} parent=1 // pred_check
      _
    $region15: #{tpu_custom_call.1} parent=1 // pred_check_branch
      %33 = sbr.rel (0) target = $region17
    $region16: #{tpu_custom_call.1} parent=1 // pred_region
      _
    $region17: #{tpu_custom_call.1} parent=1 // pred_fallthru
      _
    // Predicated region
    $region18: #{tpu_custom_call.1} parent=1 // pred_check
      _
    $region19: #{tpu_custom_call.1} parent=1 // pred_check_branch
      %35 = sbr.rel (0) target = $region21
    $region20: #{tpu_custom_call.1} parent=1 // pred_region
      _
    $region21: #{tpu_custom_call.1} parent=1 // pred_fallthru
      _
    // Predicated region
    $region22: #{tpu_custom_call.1} parent=1 // pred_check
      _
    $region23: #{tpu_custom_call.1} parent=1 // pred_check_branch
      %37 = sbr.rel (0) target = $region25
    $region24: #{tpu_custom_call.1} parent=1 // pred_region
      _
    $region25: #{tpu_custom_call.1} parent=1 // pred_fallthru
      _
    // Predicated region
    $region26: #{tpu_custom_call.1} parent=1 // pred_check
      _
    $region27: #{tpu_custom_call.1} parent=1 // pred_check_branch
      %39 = sbr.rel (0) target = $region29
    $region28: #{tpu_custom_call.1} parent=1 // pred_region
      _
    $region29: #{tpu_custom_call.1} parent=1 // pred_fallthru
      _
    // Predicated region
    $region30: #{tpu_custom_call.1} parent=1 // pred_check
      _
    $region31: #{tpu_custom_call.1} parent=1 // pred_check_branch
      %41 = sbr.rel (0) target = $region33
    $region32: #{tpu_custom_call.1} parent=1 // pred_region
      _
    $region33: #{tpu_custom_call.1} parent=1 // pred_fallthru
      _
    // Predicated region
    $region34: #{tpu_custom_call.1} parent=1 // pred_check
      _
    $region35: #{tpu_custom_call.1} parent=1 // pred_check_branch
      %43 = sbr.rel (0) target = $region37
    $region36: #{tpu_custom_call.1} parent=1 // pred_region
      _
    $region37: #{tpu_custom_call.1} parent=1 // pred_fallthru
      _
    // Predicated region
    $region38: #{tpu_custom_call.1} parent=1 // pred_check
      _
    $region39: #{tpu_custom_call.1} parent=1 // pred_check_branch
      %45 = sbr.rel (0) target = $region41
    $region40: #{tpu_custom_call.1} parent=1 // pred_region
      %46 = dma.done [#allocation3], 2048
    $region41: #{tpu_custom_call.1} parent=1 // pred_fallthru
      _
    %v48 = vld [vmem:[#allocation2] sm:$0xf]
    %v49 = vld [vmem:[#allocation2 + $0x4] sm:$0xf]
    %v50 = vld [vmem:[#allocation2 + $0x8] sm:$0xf]
    %v51 = vld [vmem:[#allocation2 + $0xc] sm:$0xf]
    %v52 = vld [vmem:[#allocation2 + $0x10] sm:$0xf]
    %v53 = vld [vmem:[#allocation2 + $0x14] sm:$0xf]
    %v54 = vld [vmem:[#allocation2 + $0x18] sm:$0xf]
    %v55 = vld [vmem:[#allocation2 + $0x1c] sm:$0xf]
    %v56 = vld [vmem:[#allocation2 + $0x20] sm:$0xf]
    %v57 = vld [vmem:[#allocation2 + $0x24] sm:$0xf]
    %v58 = vld [vmem:[#allocation2 + $0x28] sm:$0xf]
    %v59 = vld [vmem:[#allocation2 + $0x2c] sm:$0xf]
    %v60 = vld [vmem:[#allocation2 + $0x30] sm:$0xf]
    %v61 = vld [vmem:[#allocation2 + $0x34] sm:$0xf]
    %v62 = vld [vmem:[#allocation2 + $0x38] sm:$0xf]
    %v63 = vld [vmem:[#allocation2 + $0x3c] sm:$0xf]
    %v64 = vld [vmem:[#allocation2 + $0x40] sm:$0xf]
    %v65 = vld [vmem:[#allocation2 + $0x44] sm:$0xf]
    %v66 = vld [vmem:[#allocation2 + $0x48] sm:$0xf]
    %v67 = vld [vmem:[#allocation2 + $0x4c] sm:$0xf]
    %v68 = vld [vmem:[#allocation2 + $0x50] sm:$0xf]
    %v69 = vld [vmem:[#allocation2 + $0x54] sm:$0xf]
    %v70 = vld [vmem:[#allocation2 + $0x58] sm:$0xf]
    %v71 = vld [vmem:[#allocation2 + $0x5c] sm:$0xf]
    %v72 = vld [vmem:[#allocation2 + $0x60] sm:$0xf]
    %v73 = vld [vmem:[#allocation2 + $0x64] sm:$0xf]
    %v74 = vld [vmem:[#allocation2 + $0x68] sm:$0xf]
    %v75 = vld [vmem:[#allocation2 + $0x6c] sm:$0xf]
    %v76 = vld [vmem:[#allocation2 + $0x70] sm:$0xf]
    %v77 = vld [vmem:[#allocation2 + $0x74] sm:$0xf]
    %v78 = vld [vmem:[#allocation2 + $0x78] sm:$0xf]
    %v79 = vld [vmem:[#allocation2 + $0x7c] sm:$0xf]
    %v80 = vld [vmem:[%s1] sm:$0xf]
    %v81 = vld [vmem:[%s1 + $0x4] sm:$0xf]
    %v82 = vld [vmem:[%s1 + $0x8] sm:$0xf]
    %v83 = vld [vmem:[%s1 + $0xc] sm:$0xf]
    %v84 = vld [vmem:[%s1 + $0x10] sm:$0xf]
    %v85 = vld [vmem:[%s1 + $0x14] sm:$0xf]
    %v86 = vld [vmem:[%s1 + $0x18] sm:$0xf]
    %v87 = vld [vmem:[%s1 + $0x1c] sm:$0xf]
    %v88 = vld [vmem:[%s1 + $0x20] sm:$0xf]
    %v89 = vld [vmem:[%s1 + $0x24] sm:$0xf]
    %v90 = vld [vmem:[%s1 + $0x28] sm:$0xf]
    %v91 = vld [vmem:[%s1 + $0x2c] sm:$0xf]
    %v92 = vld [vmem:[%s1 + $0x30] sm:$0xf]
    %v93 = vld [vmem:[%s1 + $0x34] sm:$0xf]
    %v94 = vld [vmem:[%s1 + $0x38] sm:$0xf]
    %v95 = vld [vmem:[%s1 + $0x3c] sm:$0xf]
    %v96 = vld [vmem:[%s2] sm:$0x1]
    %v98 = vlaneseq
    %v99 = vshrl.u32 %v98, 7
    %v100 = vsub.s32 0, %v99
    %v101 = vrot.slane %v96, %v100
    %v135 = vunpack.c.l.b16 %v48
    %v136 = vunpack.c.l.b16 %v49
    %v137 = vunpack.c.l.b16 %v50
    %v138 = vunpack.c.l.b16 %v51
    %v139 = vunpack.c.l.b16 %v52
    %v140 = vunpack.c.l.b16 %v53
    %v141 = vunpack.c.l.b16 %v54
    %v142 = vunpack.c.l.b16 %v55
    %v143 = vunpack.c.l.b16 %v56
    %v144 = vunpack.c.l.b16 %v57
    %v145 = vunpack.c.l.b16 %v58
    %v146 = vunpack.c.l.b16 %v59
    %v147 = vunpack.c.l.b16 %v60
    %v148 = vunpack.c.l.b16 %v61
    %v149 = vunpack.c.l.b16 %v62
    %v150 = vunpack.c.l.b16 %v63
    %v151 = vunpack.c.l.b16 %v64
    %v152 = vunpack.c.l.b16 %v65
    %v153 = vunpack.c.l.b16 %v66
    %v154 = vunpack.c.l.b16 %v67
    %v155 = vunpack.c.l.b16 %v68
    %v156 = vunpack.c.l.b16 %v69
    %v157 = vunpack.c.l.b16 %v70
    %v158 = vunpack.c.l.b16 %v71
    %v159 = vunpack.c.l.b16 %v72
    %v160 = vunpack.c.l.b16 %v73
    %v161 = vunpack.c.l.b16 %v74
    %v162 = vunpack.c.l.b16 %v75
    %v163 = vunpack.c.l.b16 %v76
    %v164 = vunpack.c.l.b16 %v77
    %v165 = vunpack.c.l.b16 %v78
    %v166 = vunpack.c.l.b16 %v79
    %v167 = vpack.c.b16 %v136, %v135
    %v168 = vpack.c.b16 %v138, %v137
    %v169 = vpack.c.b16 %v140, %v139
    %v170 = vpack.c.b16 %v142, %v141
    %v171 = vpack.c.b16 %v144, %v143
    %v172 = vpack.c.b16 %v146, %v145
    %v173 = vpack.c.b16 %v148, %v147
    %v174 = vpack.c.b16 %v150, %v149
    %v175 = vpack.c.b16 %v152, %v151
    %v176 = vpack.c.b16 %v154, %v153
    %v177 = vpack.c.b16 %v156, %v155
    %v178 = vpack.c.b16 %v158, %v157
    %v179 = vpack.c.b16 %v160, %v159
    %v180 = vpack.c.b16 %v162, %v161
    %v181 = vpack.c.b16 %v164, %v163
    %v182 = vpack.c.b16 %v166, %v165
    %v215 = vunpack.c.l.b16 %v80
    %v216 = vunpack.c.l.b16 %v81
    %v217 = vunpack.c.l.b16 %v82
    %v218 = vunpack.c.l.b16 %v83
    %v219 = vunpack.c.l.b16 %v84
    %v220 = vunpack.c.l.b16 %v85
    %v221 = vunpack.c.l.b16 %v86
    %v222 = vunpack.c.l.b16 %v87
    %v223 = vunpack.c.l.b16 %v88
    %v224 = vunpack.c.l.b16 %v89
    %v225 = vunpack.c.l.b16 %v90
    %v226 = vunpack.c.l.b16 %v91
    %v227 = vunpack.c.l.b16 %v92
    %v228 = vunpack.c.l.b16 %v93
    %v229 = vunpack.c.l.b16 %v94
    %v230 = vunpack.c.l.b16 %v95
    %v231 = vpack.c.b16 %v216, %v215
    %v232 = vpack.c.b16 %v218, %v217
    %v233 = vpack.c.b16 %v220, %v219
    %v234 = vpack.c.b16 %v222, %v221
    %v235 = vpack.c.b16 %v224, %v223
    %v236 = vpack.c.b16 %v226, %v225
    %v237 = vpack.c.b16 %v228, %v227
    %v238 = vpack.c.b16 %v230, %v229
    %247 = vmatprep.subr.bf16.mxu0 0
    %248 = vmatpush1.bf16.msra.mxu0 %v238
    %249 = vmatprep.subr.bf16.mxu0 0
    %250 = vmatpush1.bf16.msra.mxu0 %v237
    %251 = vmatprep.subr.bf16.mxu0 0
    %252 = vmatpush1.bf16.msra.mxu0 %v236
    %253 = vmatprep.subr.bf16.mxu0 0
    %254 = vmatpush1.bf16.msra.mxu0 %v235
    %255 = vmatprep.subr.bf16.mxu0 0
    %256 = vmatpush1.bf16.msra.mxu0 %v234
    %257 = vmatprep.subr.bf16.mxu0 0
    %258 = vmatpush1.bf16.msra.mxu0 %v233
    %259 = vmatprep.subr.bf16.mxu0 0
    %260 = vmatpush1.bf16.msra.mxu0 %v232
    %261 = vmatprep.subr.bf16.mxu0 0
    %262 = vmatpush1.bf16.msra.mxu0 %v231
    %263 = vmatprep.subr.bf16.mxu0 0
    %264 = vmatpush2.bf16.msra.mxu0 0
    %265 = vmatprep.subr.bf16.mxu0 0
    %266 = vmatpush2.bf16.msra.mxu0 0
    %267 = vmatprep.subr.bf16.mxu0 0
    %268 = vmatpush2.bf16.msra.mxu0 0
    %269 = vmatprep.subr.bf16.mxu0 0
    %270 = vmatpush2.bf16.msra.mxu0 0
    %271 = vmatprep.subr.bf16.mxu0 0
    %272 = vmatpush2.bf16.msra.mxu0 0
    %273 = vmatprep.subr.bf16.mxu0 0
    %274 = vmatpush2.bf16.msra.mxu0 0
    %275 = vmatprep.subr.bf16.mxu0 0
    %276 = vmatpush2.bf16.msra.mxu0 0
    %277 = vmatprep.subr.bf16.mxu0 0
    %278 = vmatpush2.bf16.msra.mxu0 0
    %279 = vmatprep.mubr.bf16.mxu0 0
    %280 = vmatmul.mubr.bf16.gmra.mxu0 %v167
    %v281 = vpop.f32.mrf.mxu0
    %v282 = vadd.f32 %v101, %v281
    %v283 = vpop.f32.mrf.mxu0
    %v284 = vpop.f32.mrf.mxu0
    %v285 = vadd.f32 %v101, %v284
    %v286 = vpop.f32.mrf.mxu0
    %287 = vmatprep.mubr.bf16.mxu0 0
    %288 = vmatmul.mubr.bf16.gmra.mxu0 %v168
    %v289 = vpop.f32.mrf.mxu0
    %v290 = vadd.f32 %v101, %v289
    %v291 = vpop.f32.mrf.mxu0
    %v292 = vpop.f32.mrf.mxu0
    %v293 = vadd.f32 %v101, %v292
    %v294 = vpop.f32.mrf.mxu0
    %295 = vmatprep.mubr.bf16.mxu0 0
    %296 = vmatmul.mubr.bf16.gmra.mxu0 %v169
    %v297 = vpop.f32.mrf.mxu0
    %v298 = vadd.f32 %v101, %v297
    %v299 = vpop.f32.mrf.mxu0
    %v300 = vpop.f32.mrf.mxu0
    %v301 = vadd.f32 %v101, %v300
    %v302 = vpop.f32.mrf.mxu0
    %303 = vmatprep.mubr.bf16.mxu0 0
    %304 = vmatmul.mubr.bf16.gmra.mxu0 %v170
    %v305 = vpop.f32.mrf.mxu0
    %v306 = vadd.f32 %v101, %v305
    %v307 = vpop.f32.mrf.mxu0
    %v308 = vpop.f32.mrf.mxu0
    %v309 = vadd.f32 %v101, %v308
    %v310 = vpop.f32.mrf.mxu0
    %311 = vmatprep.mubr.bf16.mxu0 0
    %312 = vmatmul.mubr.bf16.gmra.mxu0 %v171
    %v313 = vpop.f32.mrf.mxu0
    %v314 = vadd.f32 %v101, %v313
    %v315 = vpop.f32.mrf.mxu0
    %v316 = vpop.f32.mrf.mxu0
    %v317 = vadd.f32 %v101, %v316
    %v318 = vpop.f32.mrf.mxu0
    %319 = vmatprep.mubr.bf16.mxu0 0
    %320 = vmatmul.mubr.bf16.gmra.mxu0 %v172
    %v321 = vpop.f32.mrf.mxu0
    %v322 = vadd.f32 %v101, %v321
    %v323 = vpop.f32.mrf.mxu0
    %v324 = vpop.f32.mrf.mxu0
    %v325 = vadd.f32 %v101, %v324
    %v326 = vpop.f32.mrf.mxu0
    %327 = vmatprep.mubr.bf16.mxu0 0
    %328 = vmatmul.mubr.bf16.gmra.mxu0 %v173
    %v329 = vpop.f32.mrf.mxu0
    %v330 = vadd.f32 %v101, %v329
    %v331 = vpop.f32.mrf.mxu0
    %v332 = vpop.f32.mrf.mxu0
    %v333 = vadd.f32 %v101, %v332
    %v334 = vpop.f32.mrf.mxu0
    %335 = vmatprep.mubr.bf16.mxu0 0
    %336 = vmatmul.mubr.bf16.gmra.mxu0 %v174
    %v337 = vpop.f32.mrf.mxu0
    %v338 = vadd.f32 %v101, %v337
    %v339 = vpop.f32.mrf.mxu0
    %v340 = vpop.f32.mrf.mxu0
    %v341 = vadd.f32 %v101, %v340
    %v342 = vpop.f32.mrf.mxu0
    %343 = vmatprep.mubr.bf16.mxu0 0
    %344 = vmatmul.mubr.bf16.gmra.mxu0 %v175
    %v345 = vpop.f32.mrf.mxu0
    %v346 = vadd.f32 %v101, %v345
    %v347 = vpop.f32.mrf.mxu0
    %v348 = vpop.f32.mrf.mxu0
    %v349 = vadd.f32 %v101, %v348
    %v350 = vpop.f32.mrf.mxu0
    %351 = vmatprep.mubr.bf16.mxu0 0
    %352 = vmatmul.mubr.bf16.gmra.mxu0 %v176
    %v353 = vpop.f32.mrf.mxu0
    %v354 = vadd.f32 %v101, %v353
    %v355 = vpop.f32.mrf.mxu0
    %v356 = vpop.f32.mrf.mxu0
    %v357 = vadd.f32 %v101, %v356
    %v358 = vpop.f32.mrf.mxu0
    %359 = vmatprep.mubr.bf16.mxu0 0
    %360 = vmatmul.mubr.bf16.gmra.mxu0 %v177
    %v361 = vpop.f32.mrf.mxu0
    %v362 = vadd.f32 %v101, %v361
    %v363 = vpop.f32.mrf.mxu0
    %v364 = vpop.f32.mrf.mxu0
    %v365 = vadd.f32 %v101, %v364
    %v366 = vpop.f32.mrf.mxu0
    %367 = vmatprep.mubr.bf16.mxu0 0
    %368 = vmatmul.mubr.bf16.gmra.mxu0 %v178
    %v369 = vpop.f32.mrf.mxu0
    %v370 = vadd.f32 %v101, %v369
    %v371 = vpop.f32.mrf.mxu0
    %v372 = vpop.f32.mrf.mxu0
    %v373 = vadd.f32 %v101, %v372
    %v374 = vpop.f32.mrf.mxu0
    %375 = vmatprep.mubr.bf16.mxu0 0
    %376 = vmatmul.mubr.bf16.gmra.mxu0 %v179
    %v377 = vpop.f32.mrf.mxu0
    %v378 = vadd.f32 %v101, %v377
    %v379 = vpop.f32.mrf.mxu0
    %v380 = vpop.f32.mrf.mxu0
    %v381 = vadd.f32 %v101, %v380
    %v382 = vpop.f32.mrf.mxu0
    %383 = vmatprep.mubr.bf16.mxu0 0
    %384 = vmatmul.mubr.bf16.gmra.mxu0 %v180
    %v385 = vpop.f32.mrf.mxu0
    %v386 = vadd.f32 %v101, %v385
    %v387 = vpop.f32.mrf.mxu0
    %v388 = vpop.f32.mrf.mxu0
    %v389 = vadd.f32 %v101, %v388
    %v390 = vpop.f32.mrf.mxu0
    %391 = vmatprep.mubr.bf16.mxu0 0
    %392 = vmatmul.mubr.bf16.gmra.mxu0 %v181
    %v393 = vpop.f32.mrf.mxu0
    %v394 = vadd.f32 %v101, %v393
    %v395 = vpop.f32.mrf.mxu0
    %v396 = vpop.f32.mrf.mxu0
    %v397 = vadd.f32 %v101, %v396
    %v398 = vpop.f32.mrf.mxu0
    %399 = vmatprep.mubr.bf16.mxu0 0
    %400 = vmatmul.mubr.bf16.gmra.mxu0 %v182
    %v401 = vpop.f32.mrf.mxu0
    %v402 = vadd.f32 %v101, %v401
    %v403 = vpop.f32.mrf.mxu0
    %v404 = vpop.f32.mrf.mxu0
    %v405 = vadd.f32 %v101, %v404
    %v406 = vpop.f32.mrf.mxu0
    %407 = vdwg.mxu0
    %v408 = vxor.u32 %v282, 2147483648
    %v409 = vxor.u32 %v285, 2147483648
    %v410 = vxor.u32 %v290, 2147483648
    %v411 = vxor.u32 %v293, 2147483648
    %v412 = vxor.u32 %v298, 2147483648
    %v413 = vxor.u32 %v301, 2147483648
    %v414 = vxor.u32 %v306, 2147483648
    %v415 = vxor.u32 %v309, 2147483648
    %v416 = vxor.u32 %v314, 2147483648
    %v417 = vxor.u32 %v317, 2147483648
    %v418 = vxor.u32 %v322, 2147483648
    %v419 = vxor.u32 %v325, 2147483648
    %v420 = vxor.u32 %v330, 2147483648
    %v421 = vxor.u32 %v333, 2147483648
    %v422 = vxor.u32 %v338, 2147483648
    %v423 = vxor.u32 %v341, 2147483648
    %v424 = vxor.u32 %v346, 2147483648
    %v425 = vxor.u32 %v349, 2147483648
    %v426 = vxor.u32 %v354, 2147483648
    %v427 = vxor.u32 %v357, 2147483648
    %v428 = vxor.u32 %v362, 2147483648
    %v429 = vxor.u32 %v365, 2147483648
    %v430 = vxor.u32 %v370, 2147483648
    %v431 = vxor.u32 %v373, 2147483648
    %v432 = vxor.u32 %v378, 2147483648
    %v433 = vxor.u32 %v381, 2147483648
    %v434 = vxor.u32 %v386, 2147483648
    %v435 = vxor.u32 %v389, 2147483648
    %v436 = vxor.u32 %v394, 2147483648
    %v437 = vxor.u32 %v397, 2147483648
    %v438 = vxor.u32 %v402, 2147483648
    %v439 = vxor.u32 %v405, 2147483648
    %v440 = vmul.f32 %v408, 1.442695
    %v441 = vpow.pop %v440
    %v442 = vmul.f32 %v409, 1.442695
    %v443 = vpow.pop %v442
    %v444 = vmul.f32 %v410, 1.442695
    %v445 = vpow.pop %v444
    %v446 = vmul.f32 %v411, 1.442695
    %v447 = vpow.pop %v446
    %v448 = vmul.f32 %v412, 1.442695
    %v449 = vpow.pop %v448
    %v450 = vmul.f32 %v413, 1.442695
    %v451 = vpow.pop %v450
    %v452 = vmul.f32 %v414, 1.442695
    %v453 = vpow.pop %v452
    %v454 = vmul.f32 %v415, 1.442695
    %v455 = vpow.pop %v454
    %v456 = vmul.f32 %v416, 1.442695
    %v457 = vpow.pop %v456
    %v458 = vmul.f32 %v417, 1.442695
    %v459 = vpow.pop %v458
    %v460 = vmul.f32 %v418, 1.442695
    %v461 = vpow.pop %v460
    %v462 = vmul.f32 %v419, 1.442695
    %v463 = vpow.pop %v462
    %v464 = vmul.f32 %v420, 1.442695
    %v465 = vpow.pop %v464
    %v466 = vmul.f32 %v421, 1.442695
    %v467 = vpow.pop %v466
    %v468 = vmul.f32 %v422, 1.442695
    %v469 = vpow.pop %v468
    %v470 = vmul.f32 %v423, 1.442695
    %v471 = vpow.pop %v470
    %v472 = vmul.f32 %v424, 1.442695
    %v473 = vpow.pop %v472
    %v474 = vmul.f32 %v425, 1.442695
    %v475 = vpow.pop %v474
    %v476 = vmul.f32 %v426, 1.442695
    %v477 = vpow.pop %v476
    %v478 = vmul.f32 %v427, 1.442695
    %v479 = vpow.pop %v478
    %v480 = vmul.f32 %v428, 1.442695
    %v481 = vpow.pop %v480
    %v482 = vmul.f32 %v429, 1.442695
    %v483 = vpow.pop %v482
    %v484 = vmul.f32 %v430, 1.442695
    %v485 = vpow.pop %v484
    %v486 = vmul.f32 %v431, 1.442695
    %v487 = vpow.pop %v486
    %v488 = vmul.f32 %v432, 1.442695
    %v489 = vpow.pop %v488
    %v490 = vmul.f32 %v433, 1.442695
    %v491 = vpow.pop %v490
    %v492 = vmul.f32 %v434, 1.442695
    %v493 = vpow.pop %v492
    %v494 = vmul.f32 %v435, 1.442695
    %v495 = vpow.pop %v494
    %v496 = vmul.f32 %v436, 1.442695
    %v497 = vpow.pop %v496
    %v498 = vmul.f32 %v437, 1.442695
    %v499 = vpow.pop %v498
    %v500 = vmul.f32 %v438, 1.442695
    %v501 = vpow.pop %v500
    %v502 = vmul.f32 %v439, 1.442695
    %v503 = vpow.pop %v502
    %v504 = vadd.f32 %v441, 1.0
    %v505 = vadd.f32 %v443, 1.0
    %v506 = vadd.f32 %v445, 1.0
    %v507 = vadd.f32 %v447, 1.0
    %v508 = vadd.f32 %v449, 1.0
    %v509 = vadd.f32 %v451, 1.0
    %v510 = vadd.f32 %v453, 1.0
    %v511 = vadd.f32 %v455, 1.0
    %v512 = vadd.f32 %v457, 1.0
    %v513 = vadd.f32 %v459, 1.0
    %v514 = vadd.f32 %v461, 1.0
    %v515 = vadd.f32 %v463, 1.0
    %v516 = vadd.f32 %v465, 1.0
    %v517 = vadd.f32 %v467, 1.0
    %v518 = vadd.f32 %v469, 1.0
    %v519 = vadd.f32 %v471, 1.0
    %v520 = vadd.f32 %v473, 1.0
    %v521 = vadd.f32 %v475, 1.0
    %v522 = vadd.f32 %v477, 1.0
    %v523 = vadd.f32 %v479, 1.0
    %v524 = vadd.f32 %v481, 1.0
    %v525 = vadd.f32 %v483, 1.0
    %v526 = vadd.f32 %v485, 1.0
    %v527 = vadd.f32 %v487, 1.0
    %v528 = vadd.f32 %v489, 1.0
    %v529 = vadd.f32 %v491, 1.0
    %v530 = vadd.f32 %v493, 1.0
    %v531 = vadd.f32 %v495, 1.0
    %v532 = vadd.f32 %v497, 1.0
    %v533 = vadd.f32 %v499, 1.0
    %v534 = vadd.f32 %v501, 1.0
    %v535 = vadd.f32 %v503, 1.0
    %v536 = vrcp.pop %v504
    %v537 = vmul.f32 1.0, %v536
    %v538 = vrcp.pop %v505
    %v539 = vmul.f32 1.0, %v538
    %v540 = vrcp.pop %v506
    %v541 = vmul.f32 1.0, %v540
    %v542 = vrcp.pop %v507
    %v543 = vmul.f32 1.0, %v542
    %v544 = vrcp.pop %v508
    %v545 = vmul.f32 1.0, %v544
    %v546 = vrcp.pop %v509
    %v547 = vmul.f32 1.0, %v546
    %v548 = vrcp.pop %v510
    %v549 = vmul.f32 1.0, %v548
    %v550 = vrcp.pop %v511
    %v551 = vmul.f32 1.0, %v550
    %v552 = vrcp.pop %v512
    %v553 = vmul.f32 1.0, %v552
    %v554 = vrcp.pop %v513
    %v555 = vmul.f32 1.0, %v554
    %v556 = vrcp.pop %v514
    %v557 = vmul.f32 1.0, %v556
    %v558 = vrcp.pop %v515
    %v559 = vmul.f32 1.0, %v558
    %v560 = vrcp.pop %v516
    %v561 = vmul.f32 1.0, %v560
    %v562 = vrcp.pop %v517
    %v563 = vmul.f32 1.0, %v562
    %v564 = vrcp.pop %v518
    %v565 = vmul.f32 1.0, %v564
    %v566 = vrcp.pop %v519
    %v567 = vmul.f32 1.0, %v566
    %v568 = vrcp.pop %v520
    %v569 = vmul.f32 1.0, %v568
    %v570 = vrcp.pop %v521
    %v571 = vmul.f32 1.0, %v570
    %v572 = vrcp.pop %v522
    %v573 = vmul.f32 1.0, %v572
    %v574 = vrcp.pop %v523
    %v575 = vmul.f32 1.0, %v574
    %v576 = vrcp.pop %v524
    %v577 = vmul.f32 1.0, %v576
    %v578 = vrcp.pop %v525
    %v579 = vmul.f32 1.0, %v578
    %v580 = vrcp.pop %v526
    %v581 = vmul.f32 1.0, %v580
    %v582 = vrcp.pop %v527
    %v583 = vmul.f32 1.0, %v582
    %v584 = vrcp.pop %v528
    %v585 = vmul.f32 1.0, %v584
    %v586 = vrcp.pop %v529
    %v587 = vmul.f32 1.0, %v586
    %v588 = vrcp.pop %v530
    %v589 = vmul.f32 1.0, %v588
    %v590 = vrcp.pop %v531
    %v591 = vmul.f32 1.0, %v590
    %v592 = vrcp.pop %v532
    %v593 = vmul.f32 1.0, %v592
    %v594 = vrcp.pop %v533
    %v595 = vmul.f32 1.0, %v594
    %v596 = vrcp.pop %v534
    %v597 = vmul.f32 1.0, %v596
    %v598 = vrcp.pop %v535
    %v599 = vmul.f32 1.0, %v598
    %v600 = vpack.c.bf16 %v539, %v537
    %v601 = vpack.c.bf16 %v543, %v541
    %v602 = vpack.c.bf16 %v547, %v545
    %v603 = vpack.c.bf16 %v551, %v549
    %v604 = vpack.c.bf16 %v555, %v553
    %v605 = vpack.c.bf16 %v559, %v557
    %v606 = vpack.c.bf16 %v563, %v561
    %v607 = vpack.c.bf16 %v567, %v565
    %v608 = vpack.c.bf16 %v571, %v569
    %v609 = vpack.c.bf16 %v575, %v573
    %v610 = vpack.c.bf16 %v579, %v577
    %v611 = vpack.c.bf16 %v583, %v581
    %v612 = vpack.c.bf16 %v587, %v585
    %v613 = vpack.c.bf16 %v591, %v589
    %v614 = vpack.c.bf16 %v595, %v593
    %v615 = vpack.c.bf16 %v599, %v597
    %v616 = vld [vmem:[%s3] sm:$0xf]
    %v617 = vld [vmem:[%s3 + $0x4] sm:$0xf]
    %v618 = vld [vmem:[%s3 + $0x8] sm:$0x3]
    %v619 = vld [vmem:[%s4] sm:$0x1]
    %v621 = vlaneseq
    %v622 = vshrl.u32 %v621, 7
    %v623 = vsub.s32 0, %v622
    %v624 = vrot.slane %v619, %v623
    %v629 = vunpack.c.l.b16 %v616
    %v630 = vunpack.c.l.b16 %v617
    %v631 = vunpack.c.l.b16 %v618
    %v632 = vpack.c.b16 %v630, %v629
    %v633 = vpack.c.b16 %v631, %v631
    %vm635 = vcmask 162816
    %v637 = vsel %vm635, %v600, 0
    %v640 = vsel %vm635, %v601, 0
    %v643 = vsel %vm635, %v602, 0
    %v646 = vsel %vm635, %v603, 0
    %v649 = vsel %vm635, %v604, 0
    %v652 = vsel %vm635, %v605, 0
    %v655 = vsel %vm635, %v606, 0
    %v658 = vsel %vm635, %v607, 0
    %v661 = vsel %vm635, %v608, 0
    %v664 = vsel %vm635, %v609, 0
    %v667 = vsel %vm635, %v610, 0
    %v670 = vsel %vm635, %v611, 0
    %v673 = vsel %vm635, %v612, 0
    %v676 = vsel %vm635, %v613, 0
    %v679 = vsel %vm635, %v614, 0
    %v682 = vsel %vm635, %v615, 0
    %vm684 = vcmask 1041408
    %v686 = vsel %vm684, %v633, 0
    %688 = vmatprep.subr.bf16.mxu0 0
    %689 = vmatpush1.bf16.msra.mxu0 0
    %690 = vmatprep.subr.bf16.mxu0 0
    %691 = vmatpush1.bf16.msra.mxu0 0
    %692 = vmatprep.subr.bf16.mxu0 0
    %693 = vmatpush1.bf16.msra.mxu0 0
    %694 = vmatprep.subr.bf16.mxu0 0
    %695 = vmatpush1.bf16.msra.mxu0 0
    %696 = vmatprep.subr.bf16.mxu0 0
    %697 = vmatpush1.bf16.msra.mxu0 0
    %698 = vmatprep.subr.bf16.mxu0 0
    %699 = vmatpush1.bf16.msra.mxu0 0
    %700 = vmatprep.subr.bf16.mxu0 0
    %701 = vmatpush1.bf16.msra.mxu0 %v686
    %702 = vmatprep.subr.bf16.mxu0 0
    %703 = vmatpush1.bf16.msra.mxu0 %v632
    %704 = vmatprep.subr.bf16.mxu0 0
    %705 = vmatpush2.bf16.msra.mxu0 0
    %706 = vmatprep.subr.bf16.mxu0 0
    %707 = vmatpush2.bf16.msra.mxu0 0
    %708 = vmatprep.subr.bf16.mxu0 0
    %709 = vmatpush2.bf16.msra.mxu0 0
    %710 = vmatprep.subr.bf16.mxu0 0
    %711 = vmatpush2.bf16.msra.mxu0 0
    %712 = vmatprep.subr.bf16.mxu0 0
    %713 = vmatpush2.bf16.msra.mxu0 0
    %714 = vmatprep.subr.bf16.mxu0 0
    %715 = vmatpush2.bf16.msra.mxu0 0
    %716 = vmatprep.subr.bf16.mxu0 0
    %717 = vmatpush2.bf16.msra.mxu0 0
    %718 = vmatprep.subr.bf16.mxu0 0
    %719 = vmatpush2.bf16.msra.mxu0 0
    %720 = vmatprep.mubr.bf16.mxu0 0
    %721 = vmatmul.mubr.bf16.gmra.mxu0 %v637
    %v722 = vpop.f32.mrf.mxu0
    %v723 = vadd.f32 %v624, %v722
    %v724 = vpop.f32.mrf.mxu0
    %v725 = vpop.f32.mrf.mxu0
    %v726 = vadd.f32 %v624, %v725
    %v727 = vpop.f32.mrf.mxu0
    %728 = vmatprep.mubr.bf16.mxu0 0
    %729 = vmatmul.mubr.bf16.gmra.mxu0 %v640
    %v730 = vpop.f32.mrf.mxu0
    %v731 = vadd.f32 %v624, %v730
    %v732 = vpop.f32.mrf.mxu0
    %v733 = vpop.f32.mrf.mxu0
    %v734 = vadd.f32 %v624, %v733
    %v735 = vpop.f32.mrf.mxu0
    %736 = vmatprep.mubr.bf16.mxu0 0
    %737 = vmatmul.mubr.bf16.gmra.mxu0 %v643
    %v738 = vpop.f32.mrf.mxu0
    %v739 = vadd.f32 %v624, %v738
    %v740 = vpop.f32.mrf.mxu0
    %v741 = vpop.f32.mrf.mxu0
    %v742 = vadd.f32 %v624, %v741
    %v743 = vpop.f32.mrf.mxu0
    %744 = vmatprep.mubr.bf16.mxu0 0
    %745 = vmatmul.mubr.bf16.gmra.mxu0 %v646
    %v746 = vpop.f32.mrf.mxu0
    %v747 = vadd.f32 %v624, %v746
    %v748 = vpop.f32.mrf.mxu0
    %v749 = vpop.f32.mrf.mxu0
    %v750 = vadd.f32 %v624, %v749
    %v751 = vpop.f32.mrf.mxu0
    %752 = vmatprep.mubr.bf16.mxu0 0
    %753 = vmatmul.mubr.bf16.gmra.mxu0 %v649
    %v754 = vpop.f32.mrf.mxu0
    %v755 = vadd.f32 %v624, %v754
    %v756 = vpop.f32.mrf.mxu0
    %v757 = vpop.f32.mrf.mxu0
    %v758 = vadd.f32 %v624, %v757
    %v759 = vpop.f32.mrf.mxu0
    %760 = vmatprep.mubr.bf16.mxu0 0
    %761 = vmatmul.mubr.bf16.gmra.mxu0 %v652
    %v762 = vpop.f32.mrf.mxu0
    %v763 = vadd.f32 %v624, %v762
    %v764 = vpop.f32.mrf.mxu0
    %v765 = vpop.f32.mrf.mxu0
    %v766 = vadd.f32 %v624, %v765
    %v767 = vpop.f32.mrf.mxu0
    %768 = vmatprep.mubr.bf16.mxu0 0
    %769 = vmatmul.mubr.bf16.gmra.mxu0 %v655
    %v770 = vpop.f32.mrf.mxu0
    %v771 = vadd.f32 %v624, %v770
    %v772 = vpop.f32.mrf.mxu0
    %v773 = vpop.f32.mrf.mxu0
    %v774 = vadd.f32 %v624, %v773
    %v775 = vpop.f32.mrf.mxu0
    %776 = vmatprep.mubr.bf16.mxu0 0
    %777 = vmatmul.mubr.bf16.gmra.mxu0 %v658
    %v778 = vpop.f32.mrf.mxu0
    %v779 = vadd.f32 %v624, %v778
    %v780 = vpop.f32.mrf.mxu0
    %v781 = vpop.f32.mrf.mxu0
    %v782 = vadd.f32 %v624, %v781
    %v783 = vpop.f32.mrf.mxu0
    %784 = vmatprep.mubr.bf16.mxu0 0
    %785 = vmatmul.mubr.bf16.gmra.mxu0 %v661
    %v786 = vpop.f32.mrf.mxu0
    %v787 = vadd.f32 %v624, %v786
    %v788 = vpop.f32.mrf.mxu0
    %v789 = vpop.f32.mrf.mxu0
    %v790 = vadd.f32 %v624, %v789
    %v791 = vpop.f32.mrf.mxu0
    %792 = vmatprep.mubr.bf16.mxu0 0
    %793 = vmatmul.mubr.bf16.gmra.mxu0 %v664
    %v794 = vpop.f32.mrf.mxu0
    %v795 = vadd.f32 %v624, %v794
    %v796 = vpop.f32.mrf.mxu0
    %v797 = vpop.f32.mrf.mxu0
    %v798 = vadd.f32 %v624, %v797
    %v799 = vpop.f32.mrf.mxu0
    %800 = vmatprep.mubr.bf16.mxu0 0
    %801 = vmatmul.mubr.bf16.gmra.mxu0 %v667
    %v802 = vpop.f32.mrf.mxu0
    %v803 = vadd.f32 %v624, %v802
    %v804 = vpop.f32.mrf.mxu0
    %v805 = vpop.f32.mrf.mxu0
    %v806 = vadd.f32 %v624, %v805
    %v807 = vpop.f32.mrf.mxu0
    %808 = vmatprep.mubr.bf16.mxu0 0
    %809 = vmatmul.mubr.bf16.gmra.mxu0 %v670
    %v810 = vpop.f32.mrf.mxu0
    %v811 = vadd.f32 %v624, %v810
    %v812 = vpop.f32.mrf.mxu0
    %v813 = vpop.f32.mrf.mxu0
    %v814 = vadd.f32 %v624, %v813
    %v815 = vpop.f32.mrf.mxu0
    %816 = vmatprep.mubr.bf16.mxu0 0
    %817 = vmatmul.mubr.bf16.gmra.mxu0 %v673
    %v818 = vpop.f32.mrf.mxu0
    %v819 = vadd.f32 %v624, %v818
    %v820 = vpop.f32.mrf.mxu0
    %v821 = vpop.f32.mrf.mxu0
    %v822 = vadd.f32 %v624, %v821
    %v823 = vpop.f32.mrf.mxu0
    %824 = vmatprep.mubr.bf16.mxu0 0
    %825 = vmatmul.mubr.bf16.gmra.mxu0 %v676
    %v826 = vpop.f32.mrf.mxu0
    %v827 = vadd.f32 %v624, %v826
    %v828 = vpop.f32.mrf.mxu0
    %v829 = vpop.f32.mrf.mxu0
    %v830 = vadd.f32 %v624, %v829
    %v831 = vpop.f32.mrf.mxu0
    %832 = vmatprep.mubr.bf16.mxu0 0
    %833 = vmatmul.mubr.bf16.gmra.mxu0 %v679
    %v834 = vpop.f32.mrf.mxu0
    %v835 = vadd.f32 %v624, %v834
    %v836 = vpop.f32.mrf.mxu0
    %v837 = vpop.f32.mrf.mxu0
    %v838 = vadd.f32 %v624, %v837
    %v839 = vpop.f32.mrf.mxu0
    %840 = vmatprep.mubr.bf16.mxu0 0
    %841 = vmatmul.mubr.bf16.gmra.mxu0 %v682
    %v842 = vpop.f32.mrf.mxu0
    %v843 = vadd.f32 %v624, %v842
    %v844 = vpop.f32.mrf.mxu0
    %v845 = vpop.f32.mrf.mxu0
    %v846 = vadd.f32 %v624, %v845
    %v847 = vpop.f32.mrf.mxu0
    %848 = vdwg.mxu0
    %v849 = vxor.u32 %v723, 2147483648
    %v850 = vxor.u32 %v726, 2147483648
    %v851 = vxor.u32 %v731, 2147483648
    %v852 = vxor.u32 %v734, 2147483648
    %v853 = vxor.u32 %v739, 2147483648
    %v854 = vxor.u32 %v742, 2147483648
    %v855 = vxor.u32 %v747, 2147483648
    %v856 = vxor.u32 %v750, 2147483648
    %v857 = vxor.u32 %v755, 2147483648
    %v858 = vxor.u32 %v758, 2147483648
    %v859 = vxor.u32 %v763, 2147483648
    %v860 = vxor.u32 %v766, 2147483648
    %v861 = vxor.u32 %v771, 2147483648
    %v862 = vxor.u32 %v774, 2147483648
    %v863 = vxor.u32 %v779, 2147483648
    %v864 = vxor.u32 %v782, 2147483648
    %v865 = vxor.u32 %v787, 2147483648
    %v866 = vxor.u32 %v790, 2147483648
    %v867 = vxor.u32 %v795, 2147483648
    %v868 = vxor.u32 %v798, 2147483648
    %v869 = vxor.u32 %v803, 2147483648
    %v870 = vxor.u32 %v806, 2147483648
    %v871 = vxor.u32 %v811, 2147483648
    %v872 = vxor.u32 %v814, 2147483648
    %v873 = vxor.u32 %v819, 2147483648
    %v874 = vxor.u32 %v822, 2147483648
    %v875 = vxor.u32 %v827, 2147483648
    %v876 = vxor.u32 %v830, 2147483648
    %v877 = vxor.u32 %v835, 2147483648
    %v878 = vxor.u32 %v838, 2147483648
    %v879 = vxor.u32 %v843, 2147483648
    %v880 = vxor.u32 %v846, 2147483648
    %v881 = vmul.f32 %v849, 1.442695
    %v882 = vpow.pop %v881
    %v883 = vmul.f32 %v850, 1.442695
    %v884 = vpow.pop %v883
    %v885 = vmul.f32 %v851, 1.442695
    %v886 = vpow.pop %v885
    %v887 = vmul.f32 %v852, 1.442695
    %v888 = vpow.pop %v887
    %v889 = vmul.f32 %v853, 1.442695
    %v890 = vpow.pop %v889
    %v891 = vmul.f32 %v854, 1.442695
    %v892 = vpow.pop %v891
    %v893 = vmul.f32 %v855, 1.442695
    %v894 = vpow.pop %v893
    %v895 = vmul.f32 %v856, 1.442695
    %v896 = vpow.pop %v895
    %v897 = vmul.f32 %v857, 1.442695
    %v898 = vpow.pop %v897
    %v899 = vmul.f32 %v858, 1.442695
    %v900 = vpow.pop %v899
    %v901 = vmul.f32 %v859, 1.442695
    %v902 = vpow.pop %v901
    %v903 = vmul.f32 %v860, 1.442695
    %v904 = vpow.pop %v903
    %v905 = vmul.f32 %v861, 1.442695
    %v906 = vpow.pop %v905
    %v907 = vmul.f32 %v862, 1.442695
    %v908 = vpow.pop %v907
    %v909 = vmul.f32 %v863, 1.442695
    %v910 = vpow.pop %v909
    %v911 = vmul.f32 %v864, 1.442695
    %v912 = vpow.pop %v911
    %v913 = vmul.f32 %v865, 1.442695
    %v914 = vpow.pop %v913
    %v915 = vmul.f32 %v866, 1.442695
    %v916 = vpow.pop %v915
    %v917 = vmul.f32 %v867, 1.442695
    %v918 = vpow.pop %v917
    %v919 = vmul.f32 %v868, 1.442695
    %v920 = vpow.pop %v919
    %v921 = vmul.f32 %v869, 1.442695
    %v922 = vpow.pop %v921
    %v923 = vmul.f32 %v870, 1.442695
    %v924 = vpow.pop %v923
    %v925 = vmul.f32 %v871, 1.442695
    %v926 = vpow.pop %v925
    %v927 = vmul.f32 %v872, 1.442695
    %v928 = vpow.pop %v927
    %v929 = vmul.f32 %v873, 1.442695
    %v930 = vpow.pop %v929
    %v931 = vmul.f32 %v874, 1.442695
    %v932 = vpow.pop %v931
    %v933 = vmul.f32 %v875, 1.442695
    %v934 = vpow.pop %v933
    %v935 = vmul.f32 %v876, 1.442695
    %v936 = vpow.pop %v935
    %v937 = vmul.f32 %v877, 1.442695
    %v938 = vpow.pop %v937
    %v939 = vmul.f32 %v878, 1.442695
    %v940 = vpow.pop %v939
    %v941 = vmul.f32 %v879, 1.442695
    %v942 = vpow.pop %v941
    %v943 = vmul.f32 %v880, 1.442695
    %v944 = vpow.pop %v943
    %v945 = vadd.f32 %v882, 1.0
    %v946 = vadd.f32 %v884, 1.0
    %v947 = vadd.f32 %v886, 1.0
    %v948 = vadd.f32 %v888, 1.0
    %v949 = vadd.f32 %v890, 1.0
    %v950 = vadd.f32 %v892, 1.0
    %v951 = vadd.f32 %v894, 1.0
    %v952 = vadd.f32 %v896, 1.0
    %v953 = vadd.f32 %v898, 1.0
    %v954 = vadd.f32 %v900, 1.0
    %v955 = vadd.f32 %v902, 1.0
    %v956 = vadd.f32 %v904, 1.0
    %v957 = vadd.f32 %v906, 1.0
    %v958 = vadd.f32 %v908, 1.0
    %v959 = vadd.f32 %v910, 1.0
    %v960 = vadd.f32 %v912, 1.0
    %v961 = vadd.f32 %v914, 1.0
    %v962 = vadd.f32 %v916, 1.0
    %v963 = vadd.f32 %v918, 1.0
    %v964 = vadd.f32 %v920, 1.0
    %v965 = vadd.f32 %v922, 1.0
    %v966 = vadd.f32 %v924, 1.0
    %v967 = vadd.f32 %v926, 1.0
    %v968 = vadd.f32 %v928, 1.0
    %v969 = vadd.f32 %v930, 1.0
    %v970 = vadd.f32 %v932, 1.0
    %v971 = vadd.f32 %v934, 1.0
    %v972 = vadd.f32 %v936, 1.0
    %v973 = vadd.f32 %v938, 1.0
    %v974 = vadd.f32 %v940, 1.0
    %v975 = vadd.f32 %v942, 1.0
    %v976 = vadd.f32 %v944, 1.0
    %v977 = vrcp.pop %v945
    %v978 = vmul.f32 1.0, %v977
    %v979 = vrcp.pop %v946
    %v980 = vmul.f32 1.0, %v979
    %v981 = vrcp.pop %v947
    %v982 = vmul.f32 1.0, %v981
    %v983 = vrcp.pop %v948
    %v984 = vmul.f32 1.0, %v983
    %v985 = vrcp.pop %v949
    %v986 = vmul.f32 1.0, %v985
    %v987 = vrcp.pop %v950
    %v988 = vmul.f32 1.0, %v987
    %v989 = vrcp.pop %v951
    %v990 = vmul.f32 1.0, %v989
    %v991 = vrcp.pop %v952
    %v992 = vmul.f32 1.0, %v991
    %v993 = vrcp.pop %v953
    %v994 = vmul.f32 1.0, %v993
    %v995 = vrcp.pop %v954
    %v996 = vmul.f32 1.0, %v995
    %v997 = vrcp.pop %v955
    %v998 = vmul.f32 1.0, %v997
    %v999 = vrcp.pop %v956
    %v1000 = vmul.f32 1.0, %v999
    %v1001 = vrcp.pop %v957
    %v1002 = vmul.f32 1.0, %v1001
    %v1003 = vrcp.pop %v958
    %v1004 = vmul.f32 1.0, %v1003
    %v1005 = vrcp.pop %v959
    %v1006 = vmul.f32 1.0, %v1005
    %v1007 = vrcp.pop %v960
    %v1008 = vmul.f32 1.0, %v1007
    %v1009 = vrcp.pop %v961
    %v1010 = vmul.f32 1.0, %v1009
    %v1011 = vrcp.pop %v962
    %v1012 = vmul.f32 1.0, %v1011
    %v1013 = vrcp.pop %v963
    %v1014 = vmul.f32 1.0, %v1013
    %v1015 = vrcp.pop %v964
    %v1016 = vmul.f32 1.0, %v1015
    %v1017 = vrcp.pop %v965
    %v1018 = vmul.f32 1.0, %v1017
    %v1019 = vrcp.pop %v966
    %v1020 = vmul.f32 1.0, %v1019
    %v1021 = vrcp.pop %v967
    %v1022 = vmul.f32 1.0, %v1021
    %v1023 = vrcp.pop %v968
    %v1024 = vmul.f32 1.0, %v1023
    %v1025 = vrcp.pop %v969
    %v1026 = vmul.f32 1.0, %v1025
    %v1027 = vrcp.pop %v970
    %v1028 = vmul.f32 1.0, %v1027
    %v1029 = vrcp.pop %v971
    %v1030 = vmul.f32 1.0, %v1029
    %v1031 = vrcp.pop %v972
    %v1032 = vmul.f32 1.0, %v1031
    %v1033 = vrcp.pop %v973
    %v1034 = vmul.f32 1.0, %v1033
    %v1035 = vrcp.pop %v974
    %v1036 = vmul.f32 1.0, %v1035
    %v1037 = vrcp.pop %v975
    %v1038 = vmul.f32 1.0, %v1037
    %v1039 = vrcp.pop %v976
    %v1040 = vmul.f32 1.0, %v1039
    %v1041 = vpack.c.bf16 %v980, %v978
    %v1042 = vpack.c.bf16 %v984, %v982
    %v1043 = vpack.c.bf16 %v988, %v986
    %v1044 = vpack.c.bf16 %v992, %v990
    %v1045 = vpack.c.bf16 %v996, %v994
    %v1046 = vpack.c.bf16 %v1000, %v998
    %v1047 = vpack.c.bf16 %v1004, %v1002
    %v1048 = vpack.c.bf16 %v1008, %v1006
    %v1049 = vpack.c.bf16 %v1012, %v1010
    %v1050 = vpack.c.bf16 %v1016, %v1014
    %v1051 = vpack.c.bf16 %v1020, %v1018
    %v1052 = vpack.c.bf16 %v1024, %v1022
    %v1053 = vpack.c.bf16 %v1028, %v1026
    %v1054 = vpack.c.bf16 %v1032, %v1030
    %v1055 = vpack.c.bf16 %v1036, %v1034
    %v1056 = vpack.c.bf16 %v1040, %v1038
    %v1057 = vld [vmem:[%s5] sm:$0xf]
    %v1058 = vld [vmem:[%s5 + $0x4] sm:$0x1]
    %v1059 = vld [vmem:[%s6] sm:$0x1]
    %v1061 = vlaneseq
    %v1062 = vshrl.u32 %v1061, 7
    %v1063 = vsub.s32 0, %v1062
    %v1064 = vrot.slane %v1059, %v1063
    %v1068 = vunpack.c.l.b16 %v1057
    %v1069 = vunpack.c.l.b16 %v1058
    %v1070 = vpack.c.b16 %v1069, %v1068
    %vm1071 = vcmask 80896
    %v1073 = vsel %vm1071, %v1041, 0
    %v1076 = vsel %vm1071, %v1042, 0
    %v1079 = vsel %vm1071, %v1043, 0
    %v1082 = vsel %vm1071, %v1044, 0
    %v1085 = vsel %vm1071, %v1045, 0
    %v1088 = vsel %vm1071, %v1046, 0
    %v1091 = vsel %vm1071, %v1047, 0
    %v1094 = vsel %vm1071, %v1048, 0
    %v1097 = vsel %vm1071, %v1049, 0
    %v1100 = vsel %vm1071, %v1050, 0
    %v1103 = vsel %vm1071, %v1051, 0
    %v1106 = vsel %vm1071, %v1052, 0
    %v1109 = vsel %vm1071, %v1053, 0
    %v1112 = vsel %vm1071, %v1054, 0
    %v1115 = vsel %vm1071, %v1055, 0
    %v1118 = vsel %vm1071, %v1056, 0
    %vm1120 = vcmask 1044480
    %v1122 = vsel %vm1120, %v1070, 0
    %1124 = vmatprep.subr.bf16.mxu0 0
    %1125 = vmatpush1.bf16.msra.mxu0 0
    %1126 = vmatprep.subr.bf16.mxu0 0
    %1127 = vmatpush1.bf16.msra.mxu0 0
    %1128 = vmatprep.subr.bf16.mxu0 0
    %1129 = vmatpush1.bf16.msra.mxu0 0
    %1130 = vmatprep.subr.bf16.mxu0 0
    %1131 = vmatpush1.bf16.msra.mxu0 0
    %1132 = vmatprep.subr.bf16.mxu0 0
    %1133 = vmatpush1.bf16.msra.mxu0 0
    %1134 = vmatprep.subr.bf16.mxu0 0
    %1135 = vmatpush1.bf16.msra.mxu0 0
    %1136 = vmatprep.subr.bf16.mxu0 0
    %1137 = vmatpush1.bf16.msra.mxu0 0
    %1138 = vmatprep.subr.bf16.mxu0 0
    %1139 = vmatpush1.bf16.msra.mxu0 %v1122
    %1140 = vmatprep.subr.bf16.mxu0 0
    %1141 = vmatpush2.bf16.msra.mxu0 0
    %1142 = vmatprep.subr.bf16.mxu0 0
    %1143 = vmatpush2.bf16.msra.mxu0 0
    %1144 = vmatprep.subr.bf16.mxu0 0
    %1145 = vmatpush2.bf16.msra.mxu0 0
    %1146 = vmatprep.subr.bf16.mxu0 0
    %1147 = vmatpush2.bf16.msra.mxu0 0
    %1148 = vmatprep.subr.bf16.mxu0 0
    %1149 = vmatpush2.bf16.msra.mxu0 0
    %1150 = vmatprep.subr.bf16.mxu0 0
    %1151 = vmatpush2.bf16.msra.mxu0 0
    %1152 = vmatprep.subr.bf16.mxu0 0
    %1153 = vmatpush2.bf16.msra.mxu0 0
    %1154 = vmatprep.subr.bf16.mxu0 0
    %1155 = vmatpush2.bf16.msra.mxu0 0
    %1156 = vmatprep.mubr.bf16.mxu0 0
    %1157 = vmatmul.mubr.bf16.gmra.mxu0 %v1073
    %v1158 = vpop.f32.mrf.mxu0
    %v1159 = vadd.f32 %v1064, %v1158
    %v1160 = vpop.f32.mrf.mxu0
    %v1161 = vpop.f32.mrf.mxu0
    %v1162 = vadd.f32 %v1064, %v1161
    %v1163 = vpop.f32.mrf.mxu0
    %1164 = vmatprep.mubr.bf16.mxu0 0
    %1165 = vmatmul.mubr.bf16.gmra.mxu0 %v1076
    %v1166 = vpop.f32.mrf.mxu0
    %v1167 = vadd.f32 %v1064, %v1166
    %v1168 = vpop.f32.mrf.mxu0
    %v1169 = vpop.f32.mrf.mxu0
    %v1170 = vadd.f32 %v1064, %v1169
    %v1171 = vpop.f32.mrf.mxu0
    %1172 = vmatprep.mubr.bf16.mxu0 0
    %1173 = vmatmul.mubr.bf16.gmra.mxu0 %v1079
    %v1174 = vpop.f32.mrf.mxu0
    %v1175 = vadd.f32 %v1064, %v1174
    %v1176 = vpop.f32.mrf.mxu0
    %v1177 = vpop.f32.mrf.mxu0
    %v1178 = vadd.f32 %v1064, %v1177
    %v1179 = vpop.f32.mrf.mxu0
    %1180 = vmatprep.mubr.bf16.mxu0 0
    %1181 = vmatmul.mubr.bf16.gmra.mxu0 %v1082
    %v1182 = vpop.f32.mrf.mxu0
    %v1183 = vadd.f32 %v1064, %v1182
    %v1184 = vpop.f32.mrf.mxu0
    %v1185 = vpop.f32.mrf.mxu0
    %v1186 = vadd.f32 %v1064, %v1185
    %v1187 = vpop.f32.mrf.mxu0
    %1188 = vmatprep.mubr.bf16.mxu0 0
    %1189 = vmatmul.mubr.bf16.gmra.mxu0 %v1085
    %v1190 = vpop.f32.mrf.mxu0
    %v1191 = vadd.f32 %v1064, %v1190
    %v1192 = vpop.f32.mrf.mxu0
    %v1193 = vpop.f32.mrf.mxu0
    %v1194 = vadd.f32 %v1064, %v1193
    %v1195 = vpop.f32.mrf.mxu0
    %1196 = vmatprep.mubr.bf16.mxu0 0
    %1197 = vmatmul.mubr.bf16.gmra.mxu0 %v1088
    %v1198 = vpop.f32.mrf.mxu0
    %v1199 = vadd.f32 %v1064, %v1198
    %v1200 = vpop.f32.mrf.mxu0
    %v1201 = vpop.f32.mrf.mxu0
    %v1202 = vadd.f32 %v1064, %v1201
    %v1203 = vpop.f32.mrf.mxu0
    %1204 = vmatprep.mubr.bf16.mxu0 0
    %1205 = vmatmul.mubr.bf16.gmra.mxu0 %v1091
    %v1206 = vpop.f32.mrf.mxu0
    %v1207 = vadd.f32 %v1064, %v1206
    %v1208 = vpop.f32.mrf.mxu0
    %v1209 = vpop.f32.mrf.mxu0
    %v1210 = vadd.f32 %v1064, %v1209
    %v1211 = vpop.f32.mrf.mxu0
    %1212 = vmatprep.mubr.bf16.mxu0 0
    %1213 = vmatmul.mubr.bf16.gmra.mxu0 %v1094
    %v1214 = vpop.f32.mrf.mxu0
    %v1215 = vadd.f32 %v1064, %v1214
    %v1216 = vpop.f32.mrf.mxu0
    %v1217 = vpop.f32.mrf.mxu0
    %v1218 = vadd.f32 %v1064, %v1217
    %v1219 = vpop.f32.mrf.mxu0
    %1220 = vmatprep.mubr.bf16.mxu0 0
    %1221 = vmatmul.mubr.bf16.gmra.mxu0 %v1097
    %v1222 = vpop.f32.mrf.mxu0
    %v1223 = vadd.f32 %v1064, %v1222
    %v1224 = vpop.f32.mrf.mxu0
    %v1225 = vpop.f32.mrf.mxu0
    %v1226 = vadd.f32 %v1064, %v1225
    %v1227 = vpop.f32.mrf.mxu0
    %1228 = vmatprep.mubr.bf16.mxu0 0
    %1229 = vmatmul.mubr.bf16.gmra.mxu0 %v1100
    %v1230 = vpop.f32.mrf.mxu0
    %v1231 = vadd.f32 %v1064, %v1230
    %v1232 = vpop.f32.mrf.mxu0
    %v1233 = vpop.f32.mrf.mxu0
    %v1234 = vadd.f32 %v1064, %v1233
    %v1235 = vpop.f32.mrf.mxu0
    %1236 = vmatprep.mubr.bf16.mxu0 0
    %1237 = vmatmul.mubr.bf16.gmra.mxu0 %v1103
    %v1238 = vpop.f32.mrf.mxu0
    %v1239 = vadd.f32 %v1064, %v1238
    %v1240 = vpop.f32.mrf.mxu0
    %v1241 = vpop.f32.mrf.mxu0
    %v1242 = vadd.f32 %v1064, %v1241
    %v1243 = vpop.f32.mrf.mxu0
    %1244 = vmatprep.mubr.bf16.mxu0 0
    %1245 = vmatmul.mubr.bf16.gmra.mxu0 %v1106
    %v1246 = vpop.f32.mrf.mxu0
    %v1247 = vadd.f32 %v1064, %v1246
    %v1248 = vpop.f32.mrf.mxu0
    %v1249 = vpop.f32.mrf.mxu0
    %v1250 = vadd.f32 %v1064, %v1249
    %v1251 = vpop.f32.mrf.mxu0
    %1252 = vmatprep.mubr.bf16.mxu0 0
    %1253 = vmatmul.mubr.bf16.gmra.mxu0 %v1109
    %v1254 = vpop.f32.mrf.mxu0
    %v1255 = vadd.f32 %v1064, %v1254
    %v1256 = vpop.f32.mrf.mxu0
    %v1257 = vpop.f32.mrf.mxu0
    %v1258 = vadd.f32 %v1064, %v1257
    %v1259 = vpop.f32.mrf.mxu0
    %1260 = vmatprep.mubr.bf16.mxu0 0
    %1261 = vmatmul.mubr.bf16.gmra.mxu0 %v1112
    %v1262 = vpop.f32.mrf.mxu0
    %v1263 = vadd.f32 %v1064, %v1262
    %v1264 = vpop.f32.mrf.mxu0
    %v1265 = vpop.f32.mrf.mxu0
    %v1266 = vadd.f32 %v1064, %v1265
    %v1267 = vpop.f32.mrf.mxu0
    %1268 = vmatprep.mubr.bf16.mxu0 0
    %1269 = vmatmul.mubr.bf16.gmra.mxu0 %v1115
    %v1270 = vpop.f32.mrf.mxu0
    %v1271 = vadd.f32 %v1064, %v1270
    %v1272 = vpop.f32.mrf.mxu0
    %v1273 = vpop.f32.mrf.mxu0
    %v1274 = vadd.f32 %v1064, %v1273
    %v1275 = vpop.f32.mrf.mxu0
    %1276 = vmatprep.mubr.bf16.mxu0 0
    %1277 = vmatmul.mubr.bf16.gmra.mxu0 %v1118
    %v1278 = vpop.f32.mrf.mxu0
    %v1279 = vadd.f32 %v1064, %v1278
    %v1280 = vpop.f32.mrf.mxu0
    %v1281 = vpop.f32.mrf.mxu0
    %v1282 = vadd.f32 %v1064, %v1281
    %v1283 = vpop.f32.mrf.mxu0
    %1284 = vdwg.mxu0
    %v1285 = vxor.u32 %v1159, 2147483648
    %v1286 = vxor.u32 %v1162, 2147483648
    %v1287 = vxor.u32 %v1167, 2147483648
    %v1288 = vxor.u32 %v1170, 2147483648
    %v1289 = vxor.u32 %v1175, 2147483648
    %v1290 = vxor.u32 %v1178, 2147483648
    %v1291 = vxor.u32 %v1183, 2147483648
    %v1292 = vxor.u32 %v1186, 2147483648
    %v1293 = vxor.u32 %v1191, 2147483648
    %v1294 = vxor.u32 %v1194, 2147483648
    %v1295 = vxor.u32 %v1199, 2147483648
    %v1296 = vxor.u32 %v1202, 2147483648
    %v1297 = vxor.u32 %v1207, 2147483648
    %v1298 = vxor.u32 %v1210, 2147483648
    %v1299 = vxor.u32 %v1215, 2147483648
    %v1300 = vxor.u32 %v1218, 2147483648
    %v1301 = vxor.u32 %v1223, 2147483648
    %v1302 = vxor.u32 %v1226, 2147483648
    %v1303 = vxor.u32 %v1231, 2147483648
    %v1304 = vxor.u32 %v1234, 2147483648
    %v1305 = vxor.u32 %v1239, 2147483648
    %v1306 = vxor.u32 %v1242, 2147483648
    %v1307 = vxor.u32 %v1247, 2147483648
    %v1308 = vxor.u32 %v1250, 2147483648
    %v1309 = vxor.u32 %v1255, 2147483648
    %v1310 = vxor.u32 %v1258, 2147483648
    %v1311 = vxor.u32 %v1263, 2147483648
    %v1312 = vxor.u32 %v1266, 2147483648
    %v1313 = vxor.u32 %v1271, 2147483648
    %v1314 = vxor.u32 %v1274, 2147483648
    %v1315 = vxor.u32 %v1279, 2147483648
    %v1316 = vxor.u32 %v1282, 2147483648
    %v1317 = vmul.f32 %v1285, 1.442695
    %v1318 = vpow.pop %v1317
    %v1319 = vmul.f32 %v1286, 1.442695
    %v1320 = vpow.pop %v1319
    %v1321 = vmul.f32 %v1287, 1.442695
    %v1322 = vpow.pop %v1321
    %v1323 = vmul.f32 %v1288, 1.442695
    %v1324 = vpow.pop %v1323
    %v1325 = vmul.f32 %v1289, 1.442695
    %v1326 = vpow.pop %v1325
    %v1327 = vmul.f32 %v1290, 1.442695
    %v1328 = vpow.pop %v1327
    %v1329 = vmul.f32 %v1291, 1.442695
    %v1330 = vpow.pop %v1329
    %v1331 = vmul.f32 %v1292, 1.442695
    %v1332 = vpow.pop %v1331
    %v1333 = vmul.f32 %v1293, 1.442695
    %v1334 = vpow.pop %v1333
    %v1335 = vmul.f32 %v1294, 1.442695
    %v1336 = vpow.pop %v1335
    %v1337 = vmul.f32 %v1295, 1.442695
    %v1338 = vpow.pop %v1337
    %v1339 = vmul.f32 %v1296, 1.442695
    %v1340 = vpow.pop %v1339
    %v1341 = vmul.f32 %v1297, 1.442695
    %v1342 = vpow.pop %v1341
    %v1343 = vmul.f32 %v1298, 1.442695
    %v1344 = vpow.pop %v1343
    %v1345 = vmul.f32 %v1299, 1.442695
    %v1346 = vpow.pop %v1345
    %v1347 = vmul.f32 %v1300, 1.442695
    %v1348 = vpow.pop %v1347
    %v1349 = vmul.f32 %v1301, 1.442695
    %v1350 = vpow.pop %v1349
    %v1351 = vmul.f32 %v1302, 1.442695
    %v1352 = vpow.pop %v1351
    %v1353 = vmul.f32 %v1303, 1.442695
    %v1354 = vpow.pop %v1353
    %v1355 = vmul.f32 %v1304, 1.442695
    %v1356 = vpow.pop %v1355
    %v1357 = vmul.f32 %v1305, 1.442695
    %v1358 = vpow.pop %v1357
    %v1359 = vmul.f32 %v1306, 1.442695
    %v1360 = vpow.pop %v1359
    %v1361 = vmul.f32 %v1307, 1.442695
    %v1362 = vpow.pop %v1361
    %v1363 = vmul.f32 %v1308, 1.442695
    %v1364 = vpow.pop %v1363
    %v1365 = vmul.f32 %v1309, 1.442695
    %v1366 = vpow.pop %v1365
    %v1367 = vmul.f32 %v1310, 1.442695
    %v1368 = vpow.pop %v1367
    %v1369 = vmul.f32 %v1311, 1.442695
    %v1370 = vpow.pop %v1369
    %v1371 = vmul.f32 %v1312, 1.442695
    %v1372 = vpow.pop %v1371
    %v1373 = vmul.f32 %v1313, 1.442695
    %v1374 = vpow.pop %v1373
    %v1375 = vmul.f32 %v1314, 1.442695
    %v1376 = vpow.pop %v1375
    %v1377 = vmul.f32 %v1315, 1.442695
    %v1378 = vpow.pop %v1377
    %v1379 = vmul.f32 %v1316, 1.442695
    %v1380 = vpow.pop %v1379
    %v1381 = vadd.f32 %v1318, 1.0
    %v1382 = vadd.f32 %v1320, 1.0
    %v1383 = vadd.f32 %v1322, 1.0
    %v1384 = vadd.f32 %v1324, 1.0
    %v1385 = vadd.f32 %v1326, 1.0
    %v1386 = vadd.f32 %v1328, 1.0
    %v1387 = vadd.f32 %v1330, 1.0
    %v1388 = vadd.f32 %v1332, 1.0
    %v1389 = vadd.f32 %v1334, 1.0
    %v1390 = vadd.f32 %v1336, 1.0
    %v1391 = vadd.f32 %v1338, 1.0
    %v1392 = vadd.f32 %v1340, 1.0
    %v1393 = vadd.f32 %v1342, 1.0
    %v1394 = vadd.f32 %v1344, 1.0
    %v1395 = vadd.f32 %v1346, 1.0
    %v1396 = vadd.f32 %v1348, 1.0
    %v1397 = vadd.f32 %v1350, 1.0
    %v1398 = vadd.f32 %v1352, 1.0
    %v1399 = vadd.f32 %v1354, 1.0
    %v1400 = vadd.f32 %v1356, 1.0
    %v1401 = vadd.f32 %v1358, 1.0
    %v1402 = vadd.f32 %v1360, 1.0
    %v1403 = vadd.f32 %v1362, 1.0
    %v1404 = vadd.f32 %v1364, 1.0
    %v1405 = vadd.f32 %v1366, 1.0
    %v1406 = vadd.f32 %v1368, 1.0
    %v1407 = vadd.f32 %v1370, 1.0
    %v1408 = vadd.f32 %v1372, 1.0
    %v1409 = vadd.f32 %v1374, 1.0
    %v1410 = vadd.f32 %v1376, 1.0
    %v1411 = vadd.f32 %v1378, 1.0
    %v1412 = vadd.f32 %v1380, 1.0
    %v1413 = vrcp.pop %v1381
    %v1414 = vmul.f32 1.0, %v1413
    %v1415 = vrcp.pop %v1382
    %v1416 = vmul.f32 1.0, %v1415
    %v1417 = vrcp.pop %v1383
    %v1418 = vmul.f32 1.0, %v1417
    %v1419 = vrcp.pop %v1384
    %v1420 = vmul.f32 1.0, %v1419
    %v1421 = vrcp.pop %v1385
    %v1422 = vmul.f32 1.0, %v1421
    %v1423 = vrcp.pop %v1386
    %v1424 = vmul.f32 1.0, %v1423
    %v1425 = vrcp.pop %v1387
    %v1426 = vmul.f32 1.0, %v1425
    %v1427 = vrcp.pop %v1388
    %v1428 = vmul.f32 1.0, %v1427
    %v1429 = vrcp.pop %v1389
    %v1430 = vmul.f32 1.0, %v1429
    %v1431 = vrcp.pop %v1390
    %v1432 = vmul.f32 1.0, %v1431
    %v1433 = vrcp.pop %v1391
    %v1434 = vmul.f32 1.0, %v1433
    %v1435 = vrcp.pop %v1392
    %v1436 = vmul.f32 1.0, %v1435
    %v1437 = vrcp.pop %v1393
    %v1438 = vmul.f32 1.0, %v1437
    %v1439 = vrcp.pop %v1394
    %v1440 = vmul.f32 1.0, %v1439
    %v1441 = vrcp.pop %v1395
    %v1442 = vmul.f32 1.0, %v1441
    %v1443 = vrcp.pop %v1396
    %v1444 = vmul.f32 1.0, %v1443
    %v1445 = vrcp.pop %v1397
    %v1446 = vmul.f32 1.0, %v1445
    %v1447 = vrcp.pop %v1398
    %v1448 = vmul.f32 1.0, %v1447
    %v1449 = vrcp.pop %v1399
    %v1450 = vmul.f32 1.0, %v1449
    %v1451 = vrcp.pop %v1400
    %v1452 = vmul.f32 1.0, %v1451
    %v1453 = vrcp.pop %v1401
    %v1454 = vmul.f32 1.0, %v1453
    %v1455 = vrcp.pop %v1402
    %v1456 = vmul.f32 1.0, %v1455
    %v1457 = vrcp.pop %v1403
    %v1458 = vmul.f32 1.0, %v1457
    %v1459 = vrcp.pop %v1404
    %v1460 = vmul.f32 1.0, %v1459
    %v1461 = vrcp.pop %v1405
    %v1462 = vmul.f32 1.0, %v1461
    %v1463 = vrcp.pop %v1406
    %v1464 = vmul.f32 1.0, %v1463
    %v1465 = vrcp.pop %v1407
    %v1466 = vmul.f32 1.0, %v1465
    %v1467 = vrcp.pop %v1408
    %v1468 = vmul.f32 1.0, %v1467
    %v1469 = vrcp.pop %v1409
    %v1470 = vmul.f32 1.0, %v1469
    %v1471 = vrcp.pop %v1410
    %v1472 = vmul.f32 1.0, %v1471
    %v1473 = vrcp.pop %v1411
    %v1474 = vmul.f32 1.0, %v1473
    %v1475 = vrcp.pop %v1412
    %v1476 = vmul.f32 1.0, %v1475
    %v1477 = vpack.c.bf16 %v1416, %v1414
    %v1478 = vpack.c.bf16 %v1420, %v1418
    %v1479 = vpack.c.bf16 %v1424, %v1422
    %v1480 = vpack.c.bf16 %v1428, %v1426
    %v1481 = vpack.c.bf16 %v1432, %v1430
    %v1482 = vpack.c.bf16 %v1436, %v1434
    %v1483 = vpack.c.bf16 %v1440, %v1438
    %v1484 = vpack.c.bf16 %v1444, %v1442
    %v1485 = vpack.c.bf16 %v1448, %v1446
    %v1486 = vpack.c.bf16 %v1452, %v1450
    %v1487 = vpack.c.bf16 %v1456, %v1454
    %v1488 = vpack.c.bf16 %v1460, %v1458
    %v1489 = vpack.c.bf16 %v1464, %v1462
    %v1490 = vpack.c.bf16 %v1468, %v1466
    %v1491 = vpack.c.bf16 %v1472, %v1470
    %v1492 = vpack.c.bf16 %v1476, %v1474
    %v1493 = vld [vmem:[%s7] sm:$0xf]
    %v1494 = vld [vmem:[%s7 + $0x4] sm:$0xf]
    %v1495 = vld [vmem:[%s7 + $0x8] sm:$0x3]
    %v1496 = vld [vmem:[%s8] sm:$0x1]
    %v1498 = vlaneseq
    %v1499 = vshrl.u32 %v1498, 7
    %v1500 = vsub.s32 0, %v1499
    %v1501 = vrot.slane %v1496, %v1500
    %v1506 = vunpack.c.l.b16 %v1493
    %v1507 = vunpack.c.l.b16 %v1494
    %v1508 = vunpack.c.l.b16 %v1495
    %v1509 = vpack.c.b16 %v1507, %v1506
    %v1510 = vpack.c.b16 %v1508, %v1508
    %v1513 = vsel %vm635, %v1477, 0
    %v1516 = vsel %vm635, %v1478, 0
    %v1519 = vsel %vm635, %v1479, 0
    %v1522 = vsel %vm635, %v1480, 0
    %v1525 = vsel %vm635, %v1481, 0
    %v1528 = vsel %vm635, %v1482, 0
    %v1531 = vsel %vm635, %v1483, 0
    %v1534 = vsel %vm635, %v1484, 0
    %v1537 = vsel %vm635, %v1485, 0
    %v1540 = vsel %vm635, %v1486, 0
    %v1543 = vsel %vm635, %v1487, 0
    %v1546 = vsel %vm635, %v1488, 0
    %v1549 = vsel %vm635, %v1489, 0
    %v1552 = vsel %vm635, %v1490, 0
    %v1555 = vsel %vm635, %v1491, 0
    %v1558 = vsel %vm635, %v1492, 0
    %v1561 = vsel %vm684, %v1510, 0
    %1563 = vmatprep.subr.bf16.mxu0 0
    %1564 = vmatpush1.bf16.msra.mxu0 0
    %1565 = vmatprep.subr.bf16.mxu0 0
    %1566 = vmatpush1.bf16.msra.mxu0 0
    %1567 = vmatprep.subr.bf16.mxu0 0
    %1568 = vmatpush1.bf16.msra.mxu0 0
    %1569 = vmatprep.subr.bf16.mxu0 0
    %1570 = vmatpush1.bf16.msra.mxu0 0
    %1571 = vmatprep.subr.bf16.mxu0 0
    %1572 = vmatpush1.bf16.msra.mxu0 0
    %1573 = vmatprep.subr.bf16.mxu0 0
    %1574 = vmatpush1.bf16.msra.mxu0 0
    %1575 = vmatprep.subr.bf16.mxu0 0
    %1576 = vmatpush1.bf16.msra.mxu0 %v1561
    %1577 = vmatprep.subr.bf16.mxu0 0
    %1578 = vmatpush1.bf16.msra.mxu0 %v1509
    %1579 = vmatprep.subr.bf16.mxu0 0
    %1580 = vmatpush2.bf16.msra.mxu0 0
    %1581 = vmatprep.subr.bf16.mxu0 0
    %1582 = vmatpush2.bf16.msra.mxu0 0
    %1583 = vmatprep.subr.bf16.mxu0 0
    %1584 = vmatpush2.bf16.msra.mxu0 0
    %1585 = vmatprep.subr.bf16.mxu0 0
    %1586 = vmatpush2.bf16.msra.mxu0 0
    %1587 = vmatprep.subr.bf16.mxu0 0
    %1588 = vmatpush2.bf16.msra.mxu0 0
    %1589 = vmatprep.subr.bf16.mxu0 0
    %1590 = vmatpush2.bf16.msra.mxu0 0
    %1591 = vmatprep.subr.bf16.mxu0 0
    %1592 = vmatpush2.bf16.msra.mxu0 0
    %1593 = vmatprep.subr.bf16.mxu0 0
    %1594 = vmatpush2.bf16.msra.mxu0 0
    %1595 = vmatprep.mubr.bf16.mxu0 0
    %1596 = vmatmul.mubr.bf16.gmra.mxu0 %v1513
    %v1597 = vpop.f32.mrf.mxu0
    %v1598 = vadd.f32 %v1501, %v1597
    %v1599 = vpop.f32.mrf.mxu0
    %v1600 = vpop.f32.mrf.mxu0
    %v1601 = vadd.f32 %v1501, %v1600
    %v1602 = vpop.f32.mrf.mxu0
    %1603 = vmatprep.mubr.bf16.mxu0 0
    %1604 = vmatmul.mubr.bf16.gmra.mxu0 %v1516
    %v1605 = vpop.f32.mrf.mxu0
    %v1606 = vadd.f32 %v1501, %v1605
    %v1607 = vpop.f32.mrf.mxu0
    %v1608 = vpop.f32.mrf.mxu0
    %v1609 = vadd.f32 %v1501, %v1608
    %v1610 = vpop.f32.mrf.mxu0
    %1611 = vmatprep.mubr.bf16.mxu0 0
    %1612 = vmatmul.mubr.bf16.gmra.mxu0 %v1519
    %v1613 = vpop.f32.mrf.mxu0
    %v1614 = vadd.f32 %v1501, %v1613
    %v1615 = vpop.f32.mrf.mxu0
    %v1616 = vpop.f32.mrf.mxu0
    %v1617 = vadd.f32 %v1501, %v1616
    %v1618 = vpop.f32.mrf.mxu0
    %1619 = vmatprep.mubr.bf16.mxu0 0
    %1620 = vmatmul.mubr.bf16.gmra.mxu0 %v1522
    %v1621 = vpop.f32.mrf.mxu0
    %v1622 = vadd.f32 %v1501, %v1621
    %v1623 = vpop.f32.mrf.mxu0
    %v1624 = vpop.f32.mrf.mxu0
    %v1625 = vadd.f32 %v1501, %v1624
    %v1626 = vpop.f32.mrf.mxu0
    %1627 = vmatprep.mubr.bf16.mxu0 0
    %1628 = vmatmul.mubr.bf16.gmra.mxu0 %v1525
    %v1629 = vpop.f32.mrf.mxu0
    %v1630 = vadd.f32 %v1501, %v1629
    %v1631 = vpop.f32.mrf.mxu0
    %v1632 = vpop.f32.mrf.mxu0
    %v1633 = vadd.f32 %v1501, %v1632
    %v1634 = vpop.f32.mrf.mxu0
    %1635 = vmatprep.mubr.bf16.mxu0 0
    %1636 = vmatmul.mubr.bf16.gmra.mxu0 %v1528
    %v1637 = vpop.f32.mrf.mxu0
    %v1638 = vadd.f32 %v1501, %v1637
    %v1639 = vpop.f32.mrf.mxu0
    %v1640 = vpop.f32.mrf.mxu0
    %v1641 = vadd.f32 %v1501, %v1640
    %v1642 = vpop.f32.mrf.mxu0
    %1643 = vmatprep.mubr.bf16.mxu0 0
    %1644 = vmatmul.mubr.bf16.gmra.mxu0 %v1531
    %v1645 = vpop.f32.mrf.mxu0
    %v1646 = vadd.f32 %v1501, %v1645
    %v1647 = vpop.f32.mrf.mxu0
    %v1648 = vpop.f32.mrf.mxu0
    %v1649 = vadd.f32 %v1501, %v1648
    %v1650 = vpop.f32.mrf.mxu0
    %1651 = vmatprep.mubr.bf16.mxu0 0
    %1652 = vmatmul.mubr.bf16.gmra.mxu0 %v1534
    %v1653 = vpop.f32.mrf.mxu0
    %v1654 = vadd.f32 %v1501, %v1653
    %v1655 = vpop.f32.mrf.mxu0
    %v1656 = vpop.f32.mrf.mxu0
    %v1657 = vadd.f32 %v1501, %v1656
    %v1658 = vpop.f32.mrf.mxu0
    %1659 = vmatprep.mubr.bf16.mxu0 0
    %1660 = vmatmul.mubr.bf16.gmra.mxu0 %v1537
    %v1661 = vpop.f32.mrf.mxu0
    %v1662 = vadd.f32 %v1501, %v1661
    %v1663 = vpop.f32.mrf.mxu0
    %v1664 = vpop.f32.mrf.mxu0
    %v1665 = vadd.f32 %v1501, %v1664
    %v1666 = vpop.f32.mrf.mxu0
    %1667 = vmatprep.mubr.bf16.mxu0 0
    %1668 = vmatmul.mubr.bf16.gmra.mxu0 %v1540
    %v1669 = vpop.f32.mrf.mxu0
    %v1670 = vadd.f32 %v1501, %v1669
    %v1671 = vpop.f32.mrf.mxu0
    %v1672 = vpop.f32.mrf.mxu0
    %v1673 = vadd.f32 %v1501, %v1672
    %v1674 = vpop.f32.mrf.mxu0
    %1675 = vmatprep.mubr.bf16.mxu0 0
    %1676 = vmatmul.mubr.bf16.gmra.mxu0 %v1543
    %v1677 = vpop.f32.mrf.mxu0
    %v1678 = vadd.f32 %v1501, %v1677
    %v1679 = vpop.f32.mrf.mxu0
    %v1680 = vpop.f32.mrf.mxu0
    %v1681 = vadd.f32 %v1501, %v1680
    %v1682 = vpop.f32.mrf.mxu0
    %1683 = vmatprep.mubr.bf16.mxu0 0
    %1684 = vmatmul.mubr.bf16.gmra.mxu0 %v1546
    %v1685 = vpop.f32.mrf.mxu0
    %v1686 = vadd.f32 %v1501, %v1685
    %v1687 = vpop.f32.mrf.mxu0
    %v1688 = vpop.f32.mrf.mxu0
    %v1689 = vadd.f32 %v1501, %v1688
    %v1690 = vpop.f32.mrf.mxu0
    %1691 = vmatprep.mubr.bf16.mxu0 0
    %1692 = vmatmul.mubr.bf16.gmra.mxu0 %v1549
    %v1693 = vpop.f32.mrf.mxu0
    %v1694 = vadd.f32 %v1501, %v1693
    %v1695 = vpop.f32.mrf.mxu0
    %v1696 = vpop.f32.mrf.mxu0
    %v1697 = vadd.f32 %v1501, %v1696
    %v1698 = vpop.f32.mrf.mxu0
    %1699 = vmatprep.mubr.bf16.mxu0 0
    %1700 = vmatmul.mubr.bf16.gmra.mxu0 %v1552
    %v1701 = vpop.f32.mrf.mxu0
    %v1702 = vadd.f32 %v1501, %v1701
    %v1703 = vpop.f32.mrf.mxu0
    %v1704 = vpop.f32.mrf.mxu0
    %v1705 = vadd.f32 %v1501, %v1704
    %v1706 = vpop.f32.mrf.mxu0
    %1707 = vmatprep.mubr.bf16.mxu0 0
    %1708 = vmatmul.mubr.bf16.gmra.mxu0 %v1555
    %v1709 = vpop.f32.mrf.mxu0
    %v1710 = vadd.f32 %v1501, %v1709
    %v1711 = vpop.f32.mrf.mxu0
    %v1712 = vpop.f32.mrf.mxu0
    %v1713 = vadd.f32 %v1501, %v1712
    %v1714 = vpop.f32.mrf.mxu0
    %1715 = vmatprep.mubr.bf16.mxu0 0
    %1716 = vmatmul.mubr.bf16.gmra.mxu0 %v1558
    %v1717 = vpop.f32.mrf.mxu0
    %v1718 = vadd.f32 %v1501, %v1717
    %v1719 = vpop.f32.mrf.mxu0
    %v1720 = vpop.f32.mrf.mxu0
    %v1721 = vadd.f32 %v1501, %v1720
    %v1722 = vpop.f32.mrf.mxu0
    %1723 = vdwg.mxu0
    %1724 = vst [vmem:[#allocation5] sm:$0xff] %v1598
    %1725 = vst [vmem:[#allocation5 + $0x8] sm:$0xff] %v1601
    %1726 = vst [vmem:[#allocation5 + $0x10] sm:$0xff] %v1606
    %1727 = vst [vmem:[#allocation5 + $0x18] sm:$0xff] %v1609
    %1728 = vst [vmem:[#allocation5 + $0x20] sm:$0xff] %v1614
    %1729 = vst [vmem:[#allocation5 + $0x28] sm:$0xff] %v1617
    %1730 = vst [vmem:[#allocation5 + $0x30] sm:$0xff] %v1622
    %1731 = vst [vmem:[#allocation5 + $0x38] sm:$0xff] %v1625
    %1732 = vst [vmem:[#allocation5 + $0x40] sm:$0xff] %v1630
    %1733 = vst [vmem:[#allocation5 + $0x48] sm:$0xff] %v1633
    %1734 = vst [vmem:[#allocation5 + $0x50] sm:$0xff] %v1638
    %1735 = vst [vmem:[#allocation5 + $0x58] sm:$0xff] %v1641
    %1736 = vst [vmem:[#allocation5 + $0x60] sm:$0xff] %v1646
    %1737 = vst [vmem:[#allocation5 + $0x68] sm:$0xff] %v1649
    %1738 = vst [vmem:[#allocation5 + $0x70] sm:$0xff] %v1654
    %1739 = vst [vmem:[#allocation5 + $0x78] sm:$0xff] %v1657
    %1740 = vst [vmem:[#allocation5 + $0x80] sm:$0xff] %v1662
    %1741 = vst [vmem:[#allocation5 + $0x88] sm:$0xff] %v1665
    %1742 = vst [vmem:[#allocation5 + $0x90] sm:$0xff] %v1670
    %1743 = vst [vmem:[#allocation5 + $0x98] sm:$0xff] %v1673
    %1744 = vst [vmem:[#allocation5 + $0xa0] sm:$0xff] %v1678
    %1745 = vst [vmem:[#allocation5 + $0xa8] sm:$0xff] %v1681
    %1746 = vst [vmem:[#allocation5 + $0xb0] sm:$0xff] %v1686
    %1747 = vst [vmem:[#allocation5 + $0xb8] sm:$0xff] %v1689
    %1748 = vst [vmem:[#allocation5 + $0xc0] sm:$0xff] %v1694
    %1749 = vst [vmem:[#allocation5 + $0xc8] sm:$0xff] %v1697
    %1750 = vst [vmem:[#allocation5 + $0xd0] sm:$0xff] %v1702
    %1751 = vst [vmem:[#allocation5 + $0xd8] sm:$0xff] %v1705
    %1752 = vst [vmem:[#allocation5 + $0xe0] sm:$0xff] %v1710
    %1753 = vst [vmem:[#allocation5 + $0xe8] sm:$0xff] %v1713
    %1754 = vst [vmem:[#allocation5 + $0xf0] sm:$0xff] %v1718
    %1755 = vst [vmem:[#allocation5 + $0xf8] sm:$0xff] %v1721
    // Predicated region
    $region42: #{tpu_custom_call.1} parent=1 // pred_check
      _
    $region43: #{tpu_custom_call.1} parent=1 // pred_check_branch
      %1757 = sbr.rel (0) target = $region45
    $region44: #{tpu_custom_call.1} parent=1 // pred_region
      %s1759 = ssub.s32 4096, 4096
      %1760 = vsyncadd [#allocation4], %s1759
      %s1761 = sshll.u32 [#allocation5], 4
      %s1762 = int_to_ptr.vmem [resolvable:$true] %s1761
      %1767 = dma.vmem_to_hbm [thread:$0]  %s1762, 4096, %s9, [#allocation4], 128, 128, 8
    $region45: #{tpu_custom_call.1} parent=1 // pred_fallthru
      _
    // Predicated region
    $region46: #{tpu_custom_call.1} parent=1 // pred_check
      _
    $region47: #{tpu_custom_call.1} parent=1 // pred_check_branch
      %1769 = sbr.rel (0) target = $region49
    $region48: #{tpu_custom_call.1} parent=1 // pred_region
      %1770 = dma.done [#allocation4], 4096
    $region49: #{tpu_custom_call.1} parent=1 // pred_fallthru
      _
    %1771 = vsyncpa [#allocation3], 1
    %1772 = vsyncpa [#allocation4], 1

</llo_original>
